<compile_context>
chip_gen: v5e
topology: v5e:2x2
jax: 0.10.0
libtpu: 0.0.40
codegen_flags: <defaults>
</compile_context>

<pallas_src>
import jax
import jax.numpy as jnp
from jax.experimental import pallas as pl
from jax.experimental.pallas import tpu as pltpu

# ---- "config" values (synthetic small sizes) -------------------------------
HIDDEN = 32      # config.lm_hidden
C_EMB = 4        # config.c_em
N_EMB = 8        # config.n_em
A_EMB = 8        # config.a_em
NEIGH = 8        # fixed neighbor count per entity (padded)
D_IN = HIDDEN + 2 * C_EMB + N_EMB          # linear1 input dim
D_MID = D_IN // 2                          # linear1 output dim (24)
A2 = A_EMB + 2                             # [ w_attn | node-score | neigh-score ]

# f32 parameter-board row layout (rows aligned to 8-sublane groups for matmuls)
_R_BWEXT = 0          # [1, A2]      extended w_attn bias (+attn bias folded in)
_R_VCOORD = 1         # [1, D_MID]   coord_w . linear1[coord] (folded coord branch)
_R_B1 = 2             # [1, D_MID]   lin1 bias + coord_b.w1c + neigh_b.w1n
_R_B2 = 3             # [1, 2]       lin2 bias
_R_M1 = 8             # [A, D_MID]   neigh_w[:A].T . linear1[neigh]
_R_M2 = 16            # [A, D_MID]   neigh_w[A:].T . linear1[neigh]
_R_W2 = 24            # [D_MID, 2]   lin2 weight
_FBOARD_ROWS = _R_W2 + D_MID               # 48

_NEG_BIG = 1e9   # additive mask value for padded neighbors


def _leaky_relu(x, slope=0.01):
    return jnp.where(x > 0, x, slope * x)


def _round_up(x, m):
    return ((x + m - 1) // m) * m


def _choose_bt(b):
    """Batch tile: multiple of 16 (bf16 sublane packing), capped at 256, and
    sized so the grid has >=2 parallel steps when possible (v7x has 2 TCs)."""
    bp8 = _round_up(b, 8)
    if bp8 <= 8:
        return 8                       # single full-array block
    if bp8 <= 32:
        return 16
    return min(_round_up((bp8 + 1) // 2, 16), 256)


# ---------------------------------------------------------------------------
# Fused kernel: per-batch-tile neighborhood attention + classification head
# ---------------------------------------------------------------------------
def geoer_fused_kernel(
        pooled_ref,      # [BT, H]               bf16
        coord_ref,       # [BT, 1]               f32
        node_ref,        # [2, BT, H]            bf16
        neigh_ref,       # [BT*2*N, H]           bf16  (row order: b, e, n)
        dbias_ref,       # [BT*2*N, 1]           f32   dist*wb + bb + mask bias
        wboard_ref,      # [2H, D_MID]           bf16  [Ww_ext ; w1_pooled]
        fboard_ref,      # [_FBOARD_ROWS, D_MID] f32   small params board
        out_ref):        # [BT, 2]               f32   log-probs
    bt = pooled_ref.shape[0]

    # -- unpack the two parameter boards (static slices) ----------------------
    ww_ext = wboard_ref[0:HIDDEN, 0:A2]                     # [H, A+2]   bf16
    w1p = wboard_ref[HIDDEN:2 * HIDDEN, :]                  # [H, D_MID] bf16

    bw_ext = fboard_ref[_R_BWEXT:_R_BWEXT + 1, 0:A2]        # [1, A+2]
    v_coord = fboard_ref[_R_VCOORD:_R_VCOORD + 1, :]        # [1, D_MID]
    b1 = fboard_ref[_R_B1:_R_B1 + 1, :]                     # [1, D_MID]
    b2 = fboard_ref[_R_B2:_R_B2 + 1, 0:2]                   # [1, 2]
    m1 = fboard_ref[_R_M1:_R_M1 + A_EMB, :]                 # [A, D_MID]
    m2 = fboard_ref[_R_M2:_R_M2 + A_EMB, :]                 # [A, D_MID]
    w2 = fboard_ref[_R_W2:_R_W2 + D_MID, 0:2]               # [D_MID, 2]

    # -- classification-head accumulator --------------------------------------
    h = jnp.dot(pooled_ref[...], w1p, preferred_element_type=jnp.float32)  # [BT,D_MID]
    # coord branch folded: xc @ w1c == coord * (wc @ w1c) + const (const in b1)
    h = h + coord_ref[...] * v_coord + b1

    # -- ONE batched projection of all 2*NEIGH neighbor embeddings ------------
    # cols 0:A = w_attn(neigh); col A+1 = neighbor's attention-score term
    nproj = jnp.dot(neigh_ref[...], ww_ext,
                    preferred_element_type=jnp.float32) + bw_ext           # [BT*2*N, A+2]
    nproj = nproj.reshape(bt, 2, NEIGH, A2)
    dbias = dbias_ref[...].reshape(bt, 2, NEIGH, 1)

    m_half = (m1, m2)
    for e in range(2):                                      # static entity unroll
        # node projection: cols 0:A = w_attn(node); col A = node score (+attn bias)
        nodep = jnp.dot(node_ref[e], ww_ext,
                        preferred_element_type=jnp.float32) + bw_ext       # [BT, A+2]
        wn = nodep[:, 0:A_EMB]                              # [BT, A]
        node_score = nodep[:, A_EMB:A_EMB + 1]              # [BT, 1]

        w_nb = nproj[:, e, :, 0:A_EMB]                      # [BT, N, A]
        neigh_score = nproj[:, e, :, A_EMB + 1:A2]          # [BT, N, 1]

        s = _leaky_relu(node_score[:, None, :] + neigh_score) + dbias[:, e]  # [BT,N,1]

        # vectorized 2-pass softmax over the NEIGH (sublane) axis; exact divide.
        # If every neighbor of a row is masked this degrades to a uniform
        # softmax over padding (same behaviour as the reference); l >= 1 so no
        # NaN/denormal issues.
        mmax = jnp.max(s, axis=1, keepdims=True)            # [BT, 1, 1]
        p = jnp.exp(s - mmax)                               # [BT, N, 1]
        l = jnp.sum(p, axis=1)                              # [BT, 1]
        ctx = jnp.sum(p * w_nb, axis=1) / l                 # [BT, A]

        sim = jnp.maximum(ctx * wn, 0.0)                    # ReLU
        # (neigh_linear . linear1) folded per entity -> one tiny matmul
        h = h + jnp.dot(sim, m_half[e], preferred_element_type=jnp.float32)

    # exact GELU (matches torch nn.GELU default)
    h = 0.5 * h * (1.0 + jax.lax.erf(h * jnp.float32(0.7071067811865476)))
    # TODO(synk): nn.Dropout omitted (eval-mode identity); train-time dropout is stochastic.

    logits = jnp.dot(h, w2, preferred_element_type=jnp.float32) + b2       # [BT, 2]
    zmax = jnp.max(logits, axis=1, keepdims=True)
    z = logits - zmax
    out_ref[...] = z - jnp.log(jnp.sum(jnp.exp(z), axis=1, keepdims=True))  # log_softmax


# ---------------------------------------------------------------------------
# Host wrapper
# ---------------------------------------------------------------------------
@jax.jit
def geoer_forward(pooled, x_coord, node_emb, neigh_emb, dist, neigh_mask, prep):
    B = pooled.shape[0]
    BT = _choose_bt(B)
    Bp = _round_up(B, BT)
    pad = Bp - B

    # bf16 activations (f32 accumulation in-kernel). Padded batch rows only
    # produce finite garbage and are sliced off at the end.
    pooled_p = jnp.pad(pooled, ((0, pad), (0, 0))).astype(jnp.bfloat16)
    coord_p = jnp.pad(x_coord, ((0, pad), (0, 0)))
    # node_emb is tiny -> cheap [B,2,H] -> [2,B,H] transpose so the kernel can
    # take per-entity tile slices for free.
    node_p = jnp.pad(jnp.transpose(node_emb, (1, 0, 2)),
                     ((0, 0), (0, pad), (0, 0))).astype(jnp.bfloat16)
    # The big neighbor tensor keeps its native [B,2,N,H] order: pad + flatten
    # only (no transpose / no extra HBM pass beyond the pad+cast).
    neigh_p = jnp.pad(neigh_emb, ((0, pad), (0, 0), (0, 0), (0, 0)))
    neigh_p = neigh_p.reshape(Bp * 2 * NEIGH, HIDDEN).astype(jnp.bfloat16)
    # Fold b_attn(dist) and the additive padding mask into one bias stream.
    dist_bias = (dist[..., 0] * prep["b_attn_w"][0, 0] + prep["b_attn_b"][0, 0]
                 + (neigh_mask - 1.0) * _NEG_BIG)                           # [B,2,N]
    dist_bias = jnp.pad(dist_bias, ((0, pad), (0, 0), (0, 0)))
    dist_bias = dist_bias.reshape(Bp * 2 * NEIGH, 1)

    out = pl.pallas_call(
        geoer_fused_kernel,
        out_shape=jax.ShapeDtypeStruct((Bp, 2), jnp.float32),
        grid=(Bp // BT,),
        in_specs=[
            pl.BlockSpec((BT, HIDDEN), lambda i: (i, 0)),                  # pooled
            pl.BlockSpec((BT, 1), lambda i: (i, 0)),                       # x_coord
            pl.BlockSpec((2, BT, HIDDEN), lambda i: (0, i, 0)),            # node emb
            pl.BlockSpec((BT * 2 * NEIGH, HIDDEN), lambda i: (i, 0)),      # neigh emb
            pl.BlockSpec((BT * 2 * NEIGH, 1), lambda i: (i, 0)),           # dist bias
            pl.BlockSpec((2 * HIDDEN, D_MID), lambda i: (0, 0)),           # bf16 board
            pl.BlockSpec((_FBOARD_ROWS, D_MID), lambda i: (0, 0)),         # f32 board
        ],
        out_specs=pl.BlockSpec((BT, 2), lambda i: (i, 0)),
        compiler_params=pltpu.CompilerParams(
            dimension_semantics=("parallel",)),
    )(pooled_p, coord_p, node_p, neigh_p, dist_bias,
      prep["wboard"], prep["fboard"])
    return out[:B]


# ---------------------------------------------------------------------------
# Parameters (torch-layout) + host-side folding / packing
# ---------------------------------------------------------------------------
def init_params(key):
    ks = jax.random.split(key, 12)
    s = 0.05
    return {
        "w_attn_w": s * jax.random.normal(ks[0], (A_EMB, HIDDEN), jnp.float32),
        "w_attn_b": s * jax.random.normal(ks[1], (1, A_EMB), jnp.float32),
        "attn_w":   s * jax.random.normal(ks[2], (1, 2 * A_EMB), jnp.float32),
        "attn_b":   s * jax.random.normal(ks[3], (1, 1), jnp.float32),
        "b_attn_w": s * jax.random.normal(ks[4], (1, 1), jnp.float32),
        "b_attn_b": s * jax.random.normal(ks[5], (1, 1), jnp.float32),
        "neigh_w":  s * jax.random.normal(ks[6], (N_EMB, 2 * A_EMB), jnp.float32),
        "neigh_b":  s * jax.random.normal(ks[7], (1, N_EMB), jnp.float32),
        "coord_w":  s * jax.random.normal(ks[8], (2 * C_EMB, 1), jnp.float32),
        "coord_b":  s * jax.random.normal(ks[9], (1, 2 * C_EMB), jnp.float32),
        "lin1_w":   s * jax.random.normal(ks[10], (D_MID, D_IN), jnp.float32),
        "lin1_b":   jnp.zeros((1, D_MID), jnp.float32),
        "lin2_w":   s * jax.random.normal(ks[11], (2, D_MID), jnp.float32),
        "lin2_b":   jnp.zeros((1, 2), jnp.float32),
    }


def prepare_params(p):
    """Fold / pre-transpose weights host-side and pack them into two boards."""
    w1_t = p["lin1_w"].T                                   # [D_IN, D_MID]
    w1p_t = w1_t[:HIDDEN]                                  # [H, D_MID]
    w1c_t = w1_t[HIDDEN:HIDDEN + 2 * C_EMB]                # [2C, D_MID]
    w1n_t = w1_t[HIDDEN + 2 * C_EMB:]                      # [N_EMB, D_MID]

    wn_t = p["neigh_w"].T                                  # [2A, N_EMB]
    m1 = wn_t[:A_EMB] @ w1n_t                              # [A, D_MID]
    m2 = wn_t[A_EMB:] @ w1n_t                              # [A, D_MID]

    # attention-score projection folded into an extended w_attn weight
    ww_t = p["w_attn_w"].T                                 # [H, A]
    wa_node = p["attn_w"][:, :A_EMB]                       # [1, A]
    wa_neigh = p["attn_w"][:, A_EMB:]                      # [1, A]
    ww_ext = jnp.concatenate(
        [ww_t, ww_t @ wa_node.T, ww_t @ wa_neigh.T], axis=1)               # [H, A+2]
    bw = p["w_attn_b"]                                     # [1, A]
    bw_ext = jnp.concatenate(
        [bw, bw @ wa_node.T + p["attn_b"], bw @ wa_neigh.T], axis=1)       # [1, A+2]

    # coord branch folded: xc @ w1c == coord * (wc @ w1c) + bc @ w1c
    v_coord = p["coord_w"].T @ w1c_t                       # [1, D_MID]
    b1f = p["lin1_b"] + p["coord_b"] @ w1c_t + p["neigh_b"] @ w1n_t        # [1, D_MID]
    w2_t = p["lin2_w"].T                                   # [D_MID, 2]

    wboard = jnp.zeros((2 * HIDDEN, D_MID), jnp.float32)
    wboard = wboard.at[0:HIDDEN, 0:A2].set(ww_ext)
    wboard = wboard.at[HIDDEN:2 * HIDDEN, :].set(w1p_t)

    fboard = jnp.zeros((_FBOARD_ROWS, D_MID), jnp.float32)
    fboard = fboard.at[_R_BWEXT, 0:A2].set(bw_ext[0])
    fboard = fboard.at[_R_VCOORD, :].set(v_coord[0])
    fboard = fboard.at[_R_B1, :].set(b1f[0])
    fboard = fboard.at[_R_B2, 0:2].set(p["lin2_b"][0])
    fboard = fboard.at[_R_M1:_R_M1 + A_EMB, :].set(m1)
    fboard = fboard.at[_R_M2:_R_M2 + A_EMB, :].set(m2)
    fboard = fboard.at[_R_W2:_R_W2 + D_MID, 0:2].set(w2_t)

    return {
        "wboard": wboard.astype(jnp.bfloat16),             # bf16 matmul weights
        "fboard": fboard,                                  # f32 small params
        "b_attn_w": p["b_attn_w"],
        "b_attn_b": p["b_attn_b"],
    }


# ---------------------------------------------------------------------------
# Pure-JAX reference (for numerical validation of the fused kernel)
# ---------------------------------------------------------------------------
def geoer_reference(pooled, x_coord, node_emb, neigh_emb, dist, neigh_mask, p):
    wattn = lambda x: x @ p["w_attn_w"].T + p["w_attn_b"][0]
    wn = wattn(node_emb)                                           # [B,2,A]
    wN = wattn(neigh_emb)                                          # [B,2,N,A]
    cat = jnp.concatenate(
        [jnp.broadcast_to(wn[:, :, None, :], wN.shape), wN], axis=-1)
    s = cat @ p["attn_w"][0] + p["attn_b"][0, 0]                   # [B,2,N]
    s = _leaky_relu(s)
    s = s + dist[..., 0] * p["b_attn_w"][0, 0] + p["b_attn_b"][0, 0]
    s = s + (neigh_mask - 1.0) * _NEG_BIG
    att = jax.nn.softmax(s, axis=2)[..., None]                     # [B,2,N,1]
    ctx = jnp.sum(wN * att, axis=2)                                # [B,2,A]
    sim = jax.nn.relu(ctx * wn)                                    # [B,2,A]
    xn = sim.reshape(sim.shape[0], 2 * A_EMB) @ p["neigh_w"].T + p["neigh_b"][0]
    xc = x_coord @ p["coord_w"].T + p["coord_b"][0]
    feat = jnp.concatenate([pooled, xc, xn], axis=1)
    h = feat @ p["lin1_w"].T + p["lin1_b"][0]
    h = 0.5 * h * (1.0 + jax.lax.erf(h / jnp.sqrt(jnp.float32(2.0))))
    logits = h @ p["lin2_w"].T + p["lin2_b"][0]
    return jax.nn.log_softmax(logits, axis=1)


if __name__ == "__main__":
    key = jax.random.PRNGKey(0)
    kp, k1, k2, k3, k4, k5 = jax.random.split(key, 6)

    B = 2
    params = init_params(kp)
    prep = prepare_params(params)

    pooled = jax.random.normal(k1, (B, HIDDEN), jnp.float32)            # BERT CLS output
    x_coord = jax.random.uniform(k2, (B, 1), jnp.float32) * 10.0        # pair distance
    node_emb = jax.random.normal(k3, (B, 2, HIDDEN), jnp.float32)       # name1/name2 embeddings
    neigh_emb = jax.random.normal(k4, (B, 2, NEIGH, HIDDEN), jnp.float32)
    dist = jax.random.uniform(k5, (B, 2, NEIGH, 1), jnp.float32) * 100.0
    neigh_mask = jnp.ones((B, 2, NEIGH), jnp.float32)                   # all neighbors valid

    out = geoer_forward(pooled, x_coord, node_emb, neigh_emb, dist, neigh_mask, prep)
    out = jax.block_until_ready(out)

    assert out.shape == (B, 2)
    assert bool(jnp.all(jnp.isfinite(out)))
    # rows of log_softmax should exp-sum to 1
    assert bool(jnp.allclose(jnp.sum(jnp.exp(out), axis=1), 1.0, atol=1e-5))

    # validate against pure-JAX f32 reference (tolerance covers bf16 inputs/weights)
    ref = geoer_reference(pooled, x_coord, node_emb, neigh_emb, dist, neigh_mask, params)
    assert bool(jnp.allclose(out, ref, atol=3e-2, rtol=3e-2))

    print("KERNEL_OK")
</pallas_src>

<mosaic_0001>
module attributes {stable_mosaic.version = 11 : i64} {
  func.func @geoer_fused_kernel(%arg0: i32, %arg1: memref<8x32xbf16, #tpu.memory_space<vmem>>, %arg2: memref<8x1xf32, #tpu.memory_space<vmem>>, %arg3: memref<2x8x32xbf16, #tpu.memory_space<vmem>>, %arg4: memref<128x32xbf16, #tpu.memory_space<vmem>>, %arg5: memref<128x1xf32, #tpu.memory_space<vmem>>, %arg6: memref<64x24xbf16, #tpu.memory_space<vmem>>, %arg7: memref<48x24xf32, #tpu.memory_space<vmem>>, %arg8: memref<8x2xf32, #tpu.memory_space<vmem>>) attributes {dimension_semantics = [#tpu.dimension_semantics<parallel>], iteration_bounds = array<i64: 1>, scalar_prefetch = 0 : i64, scratch_operands = 0 : i64, tpu.core_type = #tpu.core_type<tc>, window_params = [{transform_indices = @transform_0, window_bounds = array<i64: 8, 32>}, {transform_indices = @transform_1, window_bounds = array<i64: 8, 1>}, {transform_indices = @transform_2, window_bounds = array<i64: 2, 8, 32>}, {transform_indices = @transform_3, window_bounds = array<i64: 128, 32>}, {transform_indices = @transform_4, window_bounds = array<i64: 128, 1>}, {pipeline_mode = #tpu.pipeline_mode<synchronous>, transform_indices = @transform_5, window_bounds = array<i64: 64, 24>}, {pipeline_mode = #tpu.pipeline_mode<synchronous>, transform_indices = @transform_6, window_bounds = array<i64: 48, 24>}, {transform_indices = @transform_7, window_bounds = array<i64: 8, 2>}]} {
    %c0 = arith.constant 0 : index
    %c0_0 = arith.constant 0 : index
    %0 = vector.load %arg6[%c0, %c0_0] : memref<64x24xbf16, #tpu.memory_space<vmem>>, vector<32x10xbf16>
    %c32 = arith.constant 32 : index
    %c0_1 = arith.constant 0 : index
    %1 = vector.load %arg6[%c32, %c0_1] : memref<64x24xbf16, #tpu.memory_space<vmem>>, vector<32x24xbf16>
    %c0_2 = arith.constant 0 : index
    %c0_3 = arith.constant 0 : index
    %2 = vector.load %arg7[%c0_2, %c0_3] : memref<48x24xf32, #tpu.memory_space<vmem>>, vector<1x10xf32>
    %c1 = arith.constant 1 : index
    %c0_4 = arith.constant 0 : index
    %3 = vector.load %arg7[%c1, %c0_4] : memref<48x24xf32, #tpu.memory_space<vmem>>, vector<1x24xf32>
    %c2 = arith.constant 2 : index
    %c0_5 = arith.constant 0 : index
    %4 = vector.load %arg7[%c2, %c0_5] : memref<48x24xf32, #tpu.memory_space<vmem>>, vector<1x24xf32>
    %c3 = arith.constant 3 : index
    %c0_6 = arith.constant 0 : index
    %5 = vector.load %arg7[%c3, %c0_6] : memref<48x24xf32, #tpu.memory_space<vmem>>, vector<1x2xf32>
    %c8 = arith.constant 8 : index
    %c0_7 = arith.constant 0 : index
    %6 = vector.load %arg7[%c8, %c0_7] : memref<48x24xf32, #tpu.memory_space<vmem>>, vector<8x24xf32>
    %c16 = arith.constant 16 : index
    %c0_8 = arith.constant 0 : index
    %7 = vector.load %arg7[%c16, %c0_8] : memref<48x24xf32, #tpu.memory_space<vmem>>, vector<8x24xf32>
    %c24 = arith.constant 24 : index
    %c0_9 = arith.constant 0 : index
    %8 = vector.load %arg7[%c24, %c0_9] : memref<48x24xf32, #tpu.memory_space<vmem>>, vector<24x2xf32>
    %c0_10 = arith.constant 0 : index
    %c0_11 = arith.constant 0 : index
    %9 = vector.load %arg1[%c0_10, %c0_11] : memref<8x32xbf16, #tpu.memory_space<vmem>>, vector<8x32xbf16>
    %cst = arith.constant dense<0.000000e+00> : vector<8x24xf32>
    %10 = tpu.matmul %9, %1, %cst {dimension_numbers = #tpu.dot_dimension_numbers<[1], [0], [0], [1], [0, 0, 1, 1], [], []>} : vector<8x32xbf16>, vector<32x24xbf16>, vector<8x24xf32> -> vector<8x24xf32>
    %c0_12 = arith.constant 0 : index
    %c0_13 = arith.constant 0 : index
    %11 = vector.load %arg2[%c0_12, %c0_13] : memref<8x1xf32, #tpu.memory_space<vmem>>, vector<8x1xf32>
    %12 = vector.broadcast %11 : vector<8x1xf32> to vector<8x24xf32>
    %13 = vector.broadcast %3 : vector<1x24xf32> to vector<8x24xf32>
    %14 = arith.mulf %12, %13 : vector<8x24xf32>
    %15 = arith.addf %10, %14 : vector<8x24xf32>
    %16 = vector.broadcast %4 : vector<1x24xf32> to vector<8x24xf32>
    %17 = arith.addf %15, %16 : vector<8x24xf32>
    %c0_14 = arith.constant 0 : index
    %c0_15 = arith.constant 0 : index
    %18 = vector.load %arg4[%c0_14, %c0_15] : memref<128x32xbf16, #tpu.memory_space<vmem>>, vector<128x32xbf16>
    %cst_16 = arith.constant dense<0.000000e+00> : vector<128x10xf32>
    %19 = tpu.matmul %18, %0, %cst_16 {dimension_numbers = #tpu.dot_dimension_numbers<[1], [0], [0], [1], [0, 0, 1, 1], [], []>} : vector<128x32xbf16>, vector<32x10xbf16>, vector<128x10xf32> -> vector<128x10xf32>
    %20 = vector.broadcast %2 : vector<1x10xf32> to vector<128x10xf32>
    %21 = arith.addf %19, %20 : vector<128x10xf32>
    %22 = vector.shape_cast %21 : vector<128x10xf32> to vector<8x2x8x10xf32>
    %c0_17 = arith.constant 0 : index
    %c0_18 = arith.constant 0 : index
    %23 = vector.load %arg5[%c0_17, %c0_18] : memref<128x1xf32, #tpu.memory_space<vmem>>, vector<128x1xf32>
    %24 = vector.shape_cast %23 : vector<128x1xf32> to vector<8x2x8x1xf32>
    %c0_19 = arith.constant 0 : index
    %c0_20 = arith.constant 0 : index
    %c0_21 = arith.constant 0 : index
    %25 = vector.load %arg3[%c0_19, %c0_20, %c0_21] : memref<2x8x32xbf16, #tpu.memory_space<vmem>>, vector<1x8x32xbf16>
    %26 = vector.shape_cast %25 : vector<1x8x32xbf16> to vector<8x32xbf16>
    %cst_22 = arith.constant dense<0.000000e+00> : vector<8x10xf32>
    %27 = tpu.matmul %26, %0, %cst_22 {dimension_numbers = #tpu.dot_dimension_numbers<[1], [0], [0], [1], [0, 0, 1, 1], [], []>} : vector<8x32xbf16>, vector<32x10xbf16>, vector<8x10xf32> -> vector<8x10xf32>
    %28 = vector.broadcast %2 : vector<1x10xf32> to vector<8x10xf32>
    %29 = arith.addf %27, %28 : vector<8x10xf32>
    %30 = vector.extract_strided_slice %29 {offsets = [0, 0], sizes = [8, 8], strides = [1, 1]} : vector<8x10xf32> to vector<8x8xf32>
    %31 = vector.extract_strided_slice %29 {offsets = [0, 8], sizes = [8, 1], strides = [1, 1]} : vector<8x10xf32> to vector<8x1xf32>
    %32 = vector.extract_strided_slice %22 {offsets = [0, 0, 0, 0], sizes = [8, 1, 8, 8], strides = [1, 1, 1, 1]} : vector<8x2x8x10xf32> to vector<8x1x8x8xf32>
    %33 = vector.shape_cast %32 : vector<8x1x8x8xf32> to vector<8x8x8xf32>
    %34 = vector.extract_strided_slice %22 {offsets = [0, 0, 0, 9], sizes = [8, 1, 8, 1], strides = [1, 1, 1, 1]} : vector<8x2x8x10xf32> to vector<8x1x8x1xf32>
    %35 = vector.shape_cast %34 : vector<8x1x8x1xf32> to vector<8x8x1xf32>
    %36 = vector.shape_cast %31 : vector<8x1xf32> to vector<8x1x1xf32>
    %37 = vector.broadcast %36 : vector<8x1x1xf32> to vector<8x8x1xf32>
    %38 = arith.addf %37, %35 : vector<8x8x1xf32>
    %cst_23 = arith.constant 0.000000e+00 : f32
    %39 = vector.broadcast %cst_23 : f32 to vector<8x8x1xf32>
    %40 = arith.cmpf ogt, %38, %39 : vector<8x8x1xf32>
    %cst_24 = arith.constant 0.00999999977 : f32
    %41 = vector.broadcast %cst_24 : f32 to vector<8x8x1xf32>
    %42 = arith.mulf %41, %38 : vector<8x8x1xf32>
    %43 = arith.select %40, %38, %42 : vector<8x8x1xi1>, vector<8x8x1xf32>
    %44 = vector.extract_strided_slice %24 {offsets = [0, 0, 0, 0], sizes = [8, 1, 8, 1], strides = [1, 1, 1, 1]} : vector<8x2x8x1xf32> to vector<8x1x8x1xf32>
    %45 = vector.shape_cast %44 : vector<8x1x8x1xf32> to vector<8x8x1xf32>
    %46 = arith.addf %43, %45 : vector<8x8x1xf32>
    %cst_25 = arith.constant dense<0xFF800000> : vector<8x1xf32>
    %47 = vector.multi_reduction <maximumf>, %46, %cst_25 [1] : vector<8x8x1xf32> to vector<8x1xf32>
    %48 = vector.shape_cast %47 : vector<8x1xf32> to vector<8x1x1xf32>
    %49 = vector.broadcast %48 : vector<8x1x1xf32> to vector<8x8x1xf32>
    %50 = arith.subf %46, %49 : vector<8x8x1xf32>
    %51 = math.exp %50 : vector<8x8x1xf32>
    %cst_26 = arith.constant dense<0.000000e+00> : vector<8x1xf32>
    %52 = vector.multi_reduction <add>, %51, %cst_26 [1] : vector<8x8x1xf32> to vector<8x1xf32>
    %53 = vector.broadcast %51 : vector<8x8x1xf32> to vector<8x8x8xf32>
    %54 = arith.mulf %53, %33 : vector<8x8x8xf32>
    %cst_27 = arith.constant dense<0.000000e+00> : vector<8x8xf32>
    %55 = vector.multi_reduction <add>, %54, %cst_27 [1] : vector<8x8x8xf32> to vector<8x8xf32>
    %56 = vector.broadcast %52 : vector<8x1xf32> to vector<8x8xf32>
    %57 = arith.divf %55, %56 : vector<8x8xf32>
    %58 = arith.mulf %57, %30 : vector<8x8xf32>
    %cst_28 = arith.constant 0.000000e+00 : f32
    %59 = vector.broadcast %cst_28 : f32 to vector<8x8xf32>
    %60 = arith.maximumf %58, %59 : vector<8x8xf32>
    %cst_29 = arith.constant dense<0.000000e+00> : vector<8x24xf32>
    %61 = tpu.matmul %60, %6, %cst_29 {dimension_numbers = #tpu.dot_dimension_numbers<[1], [0], [0], [1], [0, 0, 1, 1], [], []>} : vector<8x8xf32>, vector<8x24xf32>, vector<8x24xf32> -> vector<8x24xf32>
    %62 = arith.addf %17, %61 : vector<8x24xf32>
    %c1_30 = arith.constant 1 : index
    %c0_31 = arith.constant 0 : index
    %c0_32 = arith.constant 0 : index
    %63 = vector.load %arg3[%c1_30, %c0_31, %c0_32] : memref<2x8x32xbf16, #tpu.memory_space<vmem>>, vector<1x8x32xbf16>
    %64 = vector.shape_cast %63 : vector<1x8x32xbf16> to vector<8x32xbf16>
    %cst_33 = arith.constant dense<0.000000e+00> : vector<8x10xf32>
    %65 = tpu.matmul %64, %0, %cst_33 {dimension_numbers = #tpu.dot_dimension_numbers<[1], [0], [0], [1], [0, 0, 1, 1], [], []>} : vector<8x32xbf16>, vector<32x10xbf16>, vector<8x10xf32> -> vector<8x10xf32>
    %66 = vector.broadcast %2 : vector<1x10xf32> to vector<8x10xf32>
    %67 = arith.addf %65, %66 : vector<8x10xf32>
    %68 = vector.extract_strided_slice %67 {offsets = [0, 0], sizes = [8, 8], strides = [1, 1]} : vector<8x10xf32> to vector<8x8xf32>
    %69 = vector.extract_strided_slice %67 {offsets = [0, 8], sizes = [8, 1], strides = [1, 1]} : vector<8x10xf32> to vector<8x1xf32>
    %70 = vector.extract_strided_slice %22 {offsets = [0, 1, 0, 0], sizes = [8, 1, 8, 8], strides = [1, 1, 1, 1]} : vector<8x2x8x10xf32> to vector<8x1x8x8xf32>
    %71 = vector.shape_cast %70 : vector<8x1x8x8xf32> to vector<8x8x8xf32>
    %72 = vector.extract_strided_slice %22 {offsets = [0, 1, 0, 9], sizes = [8, 1, 8, 1], strides = [1, 1, 1, 1]} : vector<8x2x8x10xf32> to vector<8x1x8x1xf32>
    %73 = vector.shape_cast %72 : vector<8x1x8x1xf32> to vector<8x8x1xf32>
    %74 = vector.shape_cast %69 : vector<8x1xf32> to vector<8x1x1xf32>
    %75 = vector.broadcast %74 : vector<8x1x1xf32> to vector<8x8x1xf32>
    %76 = arith.addf %75, %73 : vector<8x8x1xf32>
    %cst_34 = arith.constant 0.000000e+00 : f32
    %77 = vector.broadcast %cst_34 : f32 to vector<8x8x1xf32>
    %78 = arith.cmpf ogt, %76, %77 : vector<8x8x1xf32>
    %cst_35 = arith.constant 0.00999999977 : f32
    %79 = vector.broadcast %cst_35 : f32 to vector<8x8x1xf32>
    %80 = arith.mulf %79, %76 : vector<8x8x1xf32>
    %81 = arith.select %78, %76, %80 : vector<8x8x1xi1>, vector<8x8x1xf32>
    %82 = vector.extract_strided_slice %24 {offsets = [0, 1, 0, 0], sizes = [8, 1, 8, 1], strides = [1, 1, 1, 1]} : vector<8x2x8x1xf32> to vector<8x1x8x1xf32>
    %83 = vector.shape_cast %82 : vector<8x1x8x1xf32> to vector<8x8x1xf32>
    %84 = arith.addf %81, %83 : vector<8x8x1xf32>
    %cst_36 = arith.constant dense<0xFF800000> : vector<8x1xf32>
    %85 = vector.multi_reduction <maximumf>, %84, %cst_36 [1] : vector<8x8x1xf32> to vector<8x1xf32>
    %86 = vector.shape_cast %85 : vector<8x1xf32> to vector<8x1x1xf32>
    %87 = vector.broadcast %86 : vector<8x1x1xf32> to vector<8x8x1xf32>
    %88 = arith.subf %84, %87 : vector<8x8x1xf32>
    %89 = math.exp %88 : vector<8x8x1xf32>
    %cst_37 = arith.constant dense<0.000000e+00> : vector<8x1xf32>
    %90 = vector.multi_reduction <add>, %89, %cst_37 [1] : vector<8x8x1xf32> to vector<8x1xf32>
    %91 = vector.broadcast %89 : vector<8x8x1xf32> to vector<8x8x8xf32>
    %92 = arith.mulf %91, %71 : vector<8x8x8xf32>
    %cst_38 = arith.constant dense<0.000000e+00> : vector<8x8xf32>
    %93 = vector.multi_reduction <add>, %92, %cst_38 [1] : vector<8x8x8xf32> to vector<8x8xf32>
    %94 = vector.broadcast %90 : vector<8x1xf32> to vector<8x8xf32>
    %95 = arith.divf %93, %94 : vector<8x8xf32>
    %96 = arith.mulf %95, %68 : vector<8x8xf32>
    %cst_39 = arith.constant 0.000000e+00 : f32
    %97 = vector.broadcast %cst_39 : f32 to vector<8x8xf32>
    %98 = arith.maximumf %96, %97 : vector<8x8xf32>
    %cst_40 = arith.constant dense<0.000000e+00> : vector<8x24xf32>
    %99 = tpu.matmul %98, %7, %cst_40 {dimension_numbers = #tpu.dot_dimension_numbers<[1], [0], [0], [1], [0, 0, 1, 1], [], []>} : vector<8x8xf32>, vector<8x24xf32>, vector<8x24xf32> -> vector<8x24xf32>
    %100 = arith.addf %62, %99 : vector<8x24xf32>
    %cst_41 = arith.constant 5.000000e-01 : f32
    %101 = vector.broadcast %cst_41 : f32 to vector<8x24xf32>
    %102 = arith.mulf %101, %100 : vector<8x24xf32>
    %cst_42 = arith.constant 0.707106769 : f32
    %103 = vector.broadcast %cst_42 : f32 to vector<8x24xf32>
    %104 = arith.mulf %100, %103 : vector<8x24xf32>
    %105 = math.erf %104 : vector<8x24xf32>
    %cst_43 = arith.constant 1.000000e+00 : f32
    %106 = vector.broadcast %cst_43 : f32 to vector<8x24xf32>
    %107 = arith.addf %106, %105 : vector<8x24xf32>
    %108 = arith.mulf %102, %107 : vector<8x24xf32>
    %cst_44 = arith.constant dense<0.000000e+00> : vector<8x2xf32>
    %109 = tpu.matmul %108, %8, %cst_44 {dimension_numbers = #tpu.dot_dimension_numbers<[1], [0], [0], [1], [0, 0, 1, 1], [], []>} : vector<8x24xf32>, vector<24x2xf32>, vector<8x2xf32> -> vector<8x2xf32>
    %110 = vector.broadcast %5 : vector<1x2xf32> to vector<8x2xf32>
    %111 = arith.addf %109, %110 : vector<8x2xf32>
    %cst_45 = arith.constant dense<0xFF800000> : vector<8xf32>
    %112 = vector.multi_reduction <maximumf>, %111, %cst_45 [1] : vector<8x2xf32> to vector<8xf32>
    %113 = vector.shape_cast %112 : vector<8xf32> to vector<8x1xf32>
    %114 = vector.broadcast %113 : vector<8x1xf32> to vector<8x2xf32>
    %115 = arith.subf %111, %114 : vector<8x2xf32>
    %116 = math.exp %115 : vector<8x2xf32>
    %cst_46 = arith.constant dense<0.000000e+00> : vector<8xf32>
    %117 = vector.multi_reduction <add>, %116, %cst_46 [1] : vector<8x2xf32> to vector<8xf32>
    %118 = vector.shape_cast %117 : vector<8xf32> to vector<8x1xf32>
    %119 = math.log %118 : vector<8x1xf32>
    %120 = vector.broadcast %119 : vector<8x1xf32> to vector<8x2xf32>
    %121 = arith.subf %115, %120 : vector<8x2xf32>
    %c0_47 = arith.constant 0 : index
    %c0_48 = arith.constant 0 : index
    %122 = vector.load %arg8[%c0_47, %c0_48] : memref<8x2xf32, #tpu.memory_space<vmem>>, vector<8x2xf32>
    tpu.vector_store %arg8[%c0_47, %c0_48], %121 {strides = array<i32>} : memref<8x2xf32, #tpu.memory_space<vmem>>, vector<8x2xf32>,
    return
  }
  func.func @transform_0(%arg0: i32) -> (i32, i32) {
    %c0_i32 = arith.constant 0 : i32
    %c0_i32_0 = arith.constant 0 : i32
    return %arg0, %c0_i32 : i32, i32
  }
  func.func @transform_1(%arg0: i32) -> (i32, i32) {
    %c0_i32 = arith.constant 0 : i32
    %c0_i32_0 = arith.constant 0 : i32
    return %arg0, %c0_i32 : i32, i32
  }
  func.func @transform_2(%arg0: i32) -> (i32, i32, i32) {
    %c0_i32 = arith.constant 0 : i32
    %c0_i32_0 = arith.constant 0 : i32
    %c0_i32_1 = arith.constant 0 : i32
    return %c0_i32, %arg0, %c0_i32_0 : i32, i32, i32
  }
  func.func @transform_3(%arg0: i32) -> (i32, i32) {
    %c0_i32 = arith.constant 0 : i32
    %c0_i32_0 = arith.constant 0 : i32
    return %arg0, %c0_i32 : i32, i32
  }
  func.func @transform_4(%arg0: i32) -> (i32, i32) {
    %c0_i32 = arith.constant 0 : i32
    %c0_i32_0 = arith.constant 0 : i32
    return %arg0, %c0_i32 : i32, i32
  }
  func.func @transform_5(%arg0: i32) -> (i32, i32) {
    %c0_i32 = arith.constant 0 : i32
    %c0_i32_0 = arith.constant 0 : i32
    %c0_i32_1 = arith.constant 0 : i32
    return %c0_i32, %c0_i32_0 : i32, i32
  }
  func.func @transform_6(%arg0: i32) -> (i32, i32) {
    %c0_i32 = arith.constant 0 : i32
    %c0_i32_0 = arith.constant 0 : i32
    %c0_i32_1 = arith.constant 0 : i32
    return %c0_i32, %c0_i32_0 : i32, i32
  }
  func.func @transform_7(%arg0: i32) -> (i32, i32) {
    %c0_i32 = arith.constant 0 : i32
    %c0_i32_0 = arith.constant 0 : i32
    return %arg0, %c0_i32 : i32, i32
  }
}

</mosaic_0001>

<llo_original>
// kernel: geoer_forward.1
$region0: #{geoer_forward.1}
  #allocation0 [shape = 'u32[]', space=smem, size = 0x4, offset = 0x4, fixed_abs, tag = 'smem constant byte address 0x4 - core index']
  #allocation1 [shape = 'u32[72,128]{1,0:T(1,128)}', space=vmem, size = 0x9000, scoped, tag = 'internal scratch']
  %s0 = inlined_call_operand.vmem [shape: bf16[8,32], index: 0, kind: input, shape index: {}]
  %s1 = inlined_call_operand.vmem [shape: f32[8,1], index: 1, kind: input, shape index: {}]
  %s2 = inlined_call_operand.vmem [shape: bf16[2,8,32], index: 2, kind: input, shape index: {}]
  %s3 = inlined_call_operand.vmem [shape: bf16[128,32], index: 3, kind: input, shape index: {}]
  %s4 = inlined_call_operand.vmem [shape: f32[128,1], index: 4, kind: input, shape index: {}]
  %s5 = inlined_call_operand.vmem [shape: bf16[64,24], index: 5, kind: input, shape index: {}]
  %s6 = inlined_call_operand.vmem [shape: f32[48,24], index: 6, kind: input, shape index: {}]
  %s7 = inlined_call_operand.vmem [shape: f32[8,2], index: 7, kind: output, shape index: {}]
  %s8 = sld [smem:[#allocation0]]
  $region38: #{geoer_forward.1} parent=0
    _
  %s10 = ssub.s32 1, %s8
  %s11 = scalar_select 0, %s10, %s8
  // Predicated region
  $region2: #{geoer_forward.1} parent=0 // pred_check
    _
  $region3: #{geoer_forward.1} parent=0 // pred_check_branch
    %13 = sbr.rel (0) target = $region5
  $region4: #{geoer_forward.1} parent=0 // pred_region
    _
  $region5: #{geoer_forward.1} parent=0 // pred_fallthru
    _
  // Predicated region
  $region6: #{geoer_forward.1} parent=0 // pred_check
    _
  $region7: #{geoer_forward.1} parent=0 // pred_check_branch
    %15 = sbr.rel (0) target = $region9
  $region8: #{geoer_forward.1} parent=0 // pred_region
    _
  $region9: #{geoer_forward.1} parent=0 // pred_fallthru
    _
  // Predicated region
  $region10: #{geoer_forward.1} parent=0 // pred_check
    _
  $region11: #{geoer_forward.1} parent=0 // pred_check_branch
    %17 = sbr.rel (0) target = $region13
  $region12: #{geoer_forward.1} parent=0 // pred_region
    _
  $region13: #{geoer_forward.1} parent=0 // pred_fallthru
    _
  // Predicated region
  $region14: #{geoer_forward.1} parent=0 // pred_check
    _
  $region15: #{geoer_forward.1} parent=0 // pred_check_branch
    %19 = sbr.rel (0) target = $region17
  $region16: #{geoer_forward.1} parent=0 // pred_region
    _
  $region17: #{geoer_forward.1} parent=0 // pred_fallthru
    _
  // Predicated region
  $region18: #{geoer_forward.1} parent=0 // pred_check
    _
  $region19: #{geoer_forward.1} parent=0 // pred_check_branch
    %21 = sbr.rel (0) target = $region21
  $region20: #{geoer_forward.1} parent=0 // pred_region
    _
  $region21: #{geoer_forward.1} parent=0 // pred_fallthru
    _
  // Predicated region
  $region22: #{geoer_forward.1} parent=0 // pred_check
    _
  $region23: #{geoer_forward.1} parent=0 // pred_check_branch
    %23 = sbr.rel (0) target = $region25
  $region24: #{geoer_forward.1} parent=0 // pred_region
    _
  $region25: #{geoer_forward.1} parent=0 // pred_fallthru
    _
  // Predicated region
  $region26: #{geoer_forward.1} parent=0 // pred_check
    _
  $region27: #{geoer_forward.1} parent=0 // pred_check_branch
    %25 = sbr.rel (0) target = $region29
  $region28: #{geoer_forward.1} parent=0 // pred_region
    _
  $region29: #{geoer_forward.1} parent=0 // pred_fallthru
    _
  %v27 = vld [vmem:[%s5] sm:$0xf]
  %v28 = vld [vmem:[%s5 + $0x4] sm:$0xf]
  %v29 = vld [vmem:[%s5 + $0x8] sm:$0xf]
  %v30 = vld [vmem:[%s5 + $0xc] sm:$0xf]
  %v31 = vld [vmem:[%s5 + $0x10] sm:$0xf]
  %v32 = vld [vmem:[%s5 + $0x14] sm:$0xf]
  %v33 = vld [vmem:[%s5 + $0x18] sm:$0xf]
  %v34 = vld [vmem:[%s5 + $0x1c] sm:$0xf]
  %v35 = vld [vmem:[%s6] sm:$0x1]
  %v36 = vld [vmem:[%s6 + $0x1] sm:$0x1]
  %v37 = vld [vmem:[%s6 + $0x2] sm:$0x1]
  %v38 = vld [vmem:[%s6 + $0x3] sm:$0x1]
  %v39 = vld [vmem:[%s6 + $0x8] sm:$0xff]
  %v40 = vld [vmem:[%s6 + $0x10] sm:$0xff]
  %v41 = vld [vmem:[%s6 + $0x18] sm:$0xff]
  %v42 = vld [vmem:[%s6 + $0x20] sm:$0xff]
  %v43 = vld [vmem:[%s6 + $0x28] sm:$0xff]
  %v44 = vld [vmem:[%s0] sm:$0xf]
  %v45 = vld [vmem:[%s1] sm:$0xff]
  %47 = vset.pattern.permute.xlu0 0
  %48 = vperm.xlu0 %47, %v45
  %v49 = vpop.permute.xlu0 %48
  %v51 = vperm.slane %v36, 0
  %v52 = vmul.f32 %v49, %v51
  %v57 = vunpack.c.l.b16 %v31
  %v58 = vunpack.c.l.b16 %v32
  %v59 = vunpack.c.l.b16 %v33
  %v60 = vunpack.c.l.b16 %v34
  %v61 = vpack.c.b16 %v58, %v57
  %v62 = vpack.c.b16 %v60, %v59
  %vm65 = vcmask 261120
  %v67 = vsel %vm65, %v44, 0
  %69 = vmatpush.bf16.msra.mxu0 0
  %70 = vmatpush.bf16.msra.mxu0 0
  %71 = vmatpush.bf16.msra.mxu0 0
  %72 = vmatpush.bf16.msra.mxu0 0
  %73 = vmatpush.bf16.msra.mxu0 0
  %74 = vmatpush.bf16.msra.mxu0 0
  %75 = vmatpush.bf16.msra.mxu0 %v62
  %76 = vmatpush.bf16.msra.mxu0 %v61
  %77 = vmatmul.bf16.gmra.mxu0 %v67
  %v78 = vpop.f32.mrf.mxu0
  %v79 = vadd.f32 %v52, %v78
  %v80 = vpop.f32.mrf.mxu0
  %81 = vdwg.mxu0
  %v82 = vperm.slane %v37, 0
  %v83 = vadd.f32 %v79, %v82
  %v84 = vld [vmem:[%s3] sm:$0xf]
  %v85 = vld [vmem:[%s3 + $0x4] sm:$0xf]
  %v86 = vld [vmem:[%s3 + $0x8] sm:$0xf]
  %v87 = vld [vmem:[%s3 + $0xc] sm:$0xf]
  %v88 = vld [vmem:[%s3 + $0x10] sm:$0xf]
  %v89 = vld [vmem:[%s3 + $0x14] sm:$0xf]
  %v90 = vld [vmem:[%s3 + $0x18] sm:$0xf]
  %v91 = vld [vmem:[%s3 + $0x1c] sm:$0xf]
  %v92 = vld [vmem:[%s3 + $0x20] sm:$0xf]
  %v93 = vld [vmem:[%s3 + $0x24] sm:$0xf]
  %v94 = vld [vmem:[%s3 + $0x28] sm:$0xf]
  %v95 = vld [vmem:[%s3 + $0x2c] sm:$0xf]
  %v96 = vld [vmem:[%s3 + $0x30] sm:$0xf]
  %v97 = vld [vmem:[%s3 + $0x34] sm:$0xf]
  %v98 = vld [vmem:[%s3 + $0x38] sm:$0xf]
  %v99 = vld [vmem:[%s3 + $0x3c] sm:$0xf]
  %v100 = vperm.slane %v35, 0
  %v117 = vunpack.c.l.b16 %v84
  %v118 = vunpack.c.l.b16 %v85
  %v119 = vunpack.c.l.b16 %v86
  %v120 = vunpack.c.l.b16 %v87
  %v121 = vunpack.c.l.b16 %v88
  %v122 = vunpack.c.l.b16 %v89
  %v123 = vunpack.c.l.b16 %v90
  %v124 = vunpack.c.l.b16 %v91
  %v125 = vunpack.c.l.b16 %v92
  %v126 = vunpack.c.l.b16 %v93
  %v127 = vunpack.c.l.b16 %v94
  %v128 = vunpack.c.l.b16 %v95
  %v129 = vunpack.c.l.b16 %v96
  %v130 = vunpack.c.l.b16 %v97
  %v131 = vunpack.c.l.b16 %v98
  %v132 = vunpack.c.l.b16 %v99
  %v133 = vpack.c.b16 %v118, %v117
  %v134 = vpack.c.b16 %v120, %v119
  %v135 = vpack.c.b16 %v122, %v121
  %v136 = vpack.c.b16 %v124, %v123
  %v137 = vpack.c.b16 %v126, %v125
  %v138 = vpack.c.b16 %v128, %v127
  %v139 = vpack.c.b16 %v130, %v129
  %v140 = vpack.c.b16 %v132, %v131
  %v145 = vunpack.c.l.b16 %v27
  %v146 = vunpack.c.l.b16 %v28
  %v147 = vunpack.c.l.b16 %v29
  %v148 = vunpack.c.l.b16 %v30
  %v149 = vpack.c.b16 %v146, %v145
  %v150 = vpack.c.b16 %v148, %v147
  %v154 = vsel %vm65, %v133, 0
  %v157 = vsel %vm65, %v134, 0
  %v160 = vsel %vm65, %v135, 0
  %v163 = vsel %vm65, %v136, 0
  %v166 = vsel %vm65, %v137, 0
  %v169 = vsel %vm65, %v138, 0
  %v172 = vsel %vm65, %v139, 0
  %v175 = vsel %vm65, %v140, 0
  %177 = vmatpush.bf16.msra.mxu0 0
  %178 = vmatpush.bf16.msra.mxu0 0
  %179 = vmatpush.bf16.msra.mxu0 0
  %180 = vmatpush.bf16.msra.mxu0 0
  %181 = vmatpush.bf16.msra.mxu0 0
  %182 = vmatpush.bf16.msra.mxu0 0
  %183 = vmatpush.bf16.msra.mxu0 %v150
  %184 = vmatpush.bf16.msra.mxu0 %v149
  %185 = vmatmul.bf16.gmra.mxu0 %v154
  %v186 = vpop.f32.mrf.mxu0
  %v187 = vadd.f32 %v100, %v186
  %v188 = vpop.f32.mrf.mxu0
  %v189 = vadd.f32 %v100, %v188
  %190 = vmatmul.bf16.gmra.mxu0 %v157
  %v191 = vpop.f32.mrf.mxu0
  %v192 = vadd.f32 %v100, %v191
  %v193 = vpop.f32.mrf.mxu0
  %v194 = vadd.f32 %v100, %v193
  %195 = vmatmul.bf16.gmra.mxu0 %v160
  %v196 = vpop.f32.mrf.mxu0
  %v197 = vadd.f32 %v100, %v196
  %v198 = vpop.f32.mrf.mxu0
  %v199 = vadd.f32 %v100, %v198
  %200 = vmatmul.bf16.gmra.mxu0 %v163
  %v201 = vpop.f32.mrf.mxu0
  %v202 = vadd.f32 %v100, %v201
  %v203 = vpop.f32.mrf.mxu0
  %v204 = vadd.f32 %v100, %v203
  %205 = vmatmul.bf16.gmra.mxu0 %v166
  %v206 = vpop.f32.mrf.mxu0
  %v207 = vadd.f32 %v100, %v206
  %v208 = vpop.f32.mrf.mxu0
  %v209 = vadd.f32 %v100, %v208
  %210 = vmatmul.bf16.gmra.mxu0 %v169
  %v211 = vpop.f32.mrf.mxu0
  %v212 = vadd.f32 %v100, %v211
  %v213 = vpop.f32.mrf.mxu0
  %v214 = vadd.f32 %v100, %v213
  %215 = vmatmul.bf16.gmra.mxu0 %v172
  %v216 = vpop.f32.mrf.mxu0
  %v217 = vadd.f32 %v100, %v216
  %v218 = vpop.f32.mrf.mxu0
  %v219 = vadd.f32 %v100, %v218
  %220 = vmatmul.bf16.gmra.mxu0 %v175
  %v221 = vpop.f32.mrf.mxu0
  %v222 = vadd.f32 %v100, %v221
  %v223 = vpop.f32.mrf.mxu0
  %v224 = vadd.f32 %v100, %v223
  %225 = vdwg.mxu0
  %v226 = vld [vmem:[%s4] sm:$0xff]
  %v227 = vld [vmem:[%s4 + $0x8] sm:$0xff]
  %v228 = vld [vmem:[%s4 + $0x10] sm:$0xff]
  %v229 = vld [vmem:[%s4 + $0x18] sm:$0xff]
  %v230 = vld [vmem:[%s4 + $0x20] sm:$0xff]
  %v231 = vld [vmem:[%s4 + $0x28] sm:$0xff]
  %v232 = vld [vmem:[%s4 + $0x30] sm:$0xff]
  %v233 = vld [vmem:[%s4 + $0x38] sm:$0xff]
  %v234 = vld [vmem:[%s4 + $0x40] sm:$0xff]
  %v235 = vld [vmem:[%s4 + $0x48] sm:$0xff]
  %v236 = vld [vmem:[%s4 + $0x50] sm:$0xff]
  %v237 = vld [vmem:[%s4 + $0x58] sm:$0xff]
  %v238 = vld [vmem:[%s4 + $0x60] sm:$0xff]
  %v239 = vld [vmem:[%s4 + $0x68] sm:$0xff]
  %v240 = vld [vmem:[%s4 + $0x70] sm:$0xff]
  %v241 = vld [vmem:[%s4 + $0x78] sm:$0xff]
  %v242 = vld [vmem:[%s2] sm:$0xf]
  %v244 = vsel %vm65, %v242, 0
  %246 = vmatpush.bf16.msra.mxu0 0
  %247 = vmatpush.bf16.msra.mxu0 0
  %248 = vmatpush.bf16.msra.mxu0 0
  %249 = vmatpush.bf16.msra.mxu0 0
  %250 = vmatpush.bf16.msra.mxu0 0
  %251 = vmatpush.bf16.msra.mxu0 0
  %252 = vmatpush.bf16.msra.mxu0 %v150
  %253 = vmatpush.bf16.msra.mxu0 %v149
  %254 = vmatmul.bf16.gmra.mxu0 %v244
  %v255 = vpop.f32.mrf.mxu0
  %v256 = vadd.f32 %v100, %v255
  %v257 = vpop.f32.mrf.mxu0
  %258 = vdwg.mxu0
  %v260 = vrot.slane %v256, 1
  %v261 = vrot.slane %v256, 2
  %v262 = vrot.slane %v256, 3
  %v263 = vrot.slane %v256, 4
  %v264 = vrot.slane %v256, 5
  %v265 = vrot.slane %v256, 6
  %v266 = vrot.slane %v256, 7
  %v267 = vperm.slane %v256, 0
  %v268 = vperm.slane %v260, 0
  %v269 = vperm.slane %v261, 0
  %v270 = vperm.slane %v262, 0
  %v271 = vperm.slane %v263, 0
  %v272 = vperm.slane %v264, 0
  %v273 = vperm.slane %v265, 0
  %v274 = vperm.slane %v266, 0
  %291 = vrot.lane.b32.xlu0 %v187, 127
  %v292 = vpop.permute.xlu0 %291
  %293 = vrot.lane.b32.xlu0 %v192, 127
  %v294 = vpop.permute.xlu0 %293
  %295 = vrot.lane.b32.xlu0 %v197, 127
  %v296 = vpop.permute.xlu0 %295
  %297 = vrot.lane.b32.xlu0 %v202, 127
  %v298 = vpop.permute.xlu0 %297
  %299 = vrot.lane.b32.xlu0 %v207, 127
  %v300 = vpop.permute.xlu0 %299
  %301 = vrot.lane.b32.xlu0 %v212, 127
  %v302 = vpop.permute.xlu0 %301
  %303 = vrot.lane.b32.xlu0 %v217, 127
  %v304 = vpop.permute.xlu0 %303
  %305 = vrot.lane.b32.xlu0 %v222, 127
  %v306 = vpop.permute.xlu0 %305
  %v315 = vadd.f32 %v267, %v292
  %v316 = vadd.f32 %v268, %v294
  %v317 = vadd.f32 %v269, %v296
  %v318 = vadd.f32 %v270, %v298
  %v319 = vadd.f32 %v271, %v300
  %v320 = vadd.f32 %v272, %v302
  %v321 = vadd.f32 %v273, %v304
  %v322 = vadd.f32 %v274, %v306
  %vm323 = vcmp.gt.f32.partialorder %v315, 0.0
  %vm324 = vcmp.gt.f32.partialorder %v316, 0.0
  %vm325 = vcmp.gt.f32.partialorder %v317, 0.0
  %vm326 = vcmp.gt.f32.partialorder %v318, 0.0
  %vm327 = vcmp.gt.f32.partialorder %v319, 0.0
  %vm328 = vcmp.gt.f32.partialorder %v320, 0.0
  %vm329 = vcmp.gt.f32.partialorder %v321, 0.0
  %vm330 = vcmp.gt.f32.partialorder %v322, 0.0
  %v331 = vmul.f32 %v315, 0.01
  %v332 = vmul.f32 %v316, 0.01
  %v333 = vmul.f32 %v317, 0.01
  %v334 = vmul.f32 %v318, 0.01
  %v335 = vmul.f32 %v319, 0.01
  %v336 = vmul.f32 %v320, 0.01
  %v337 = vmul.f32 %v321, 0.01
  %v338 = vmul.f32 %v322, 0.01
  %v339 = vsel %vm323, %v315, %v331
  %v340 = vsel %vm324, %v316, %v332
  %v341 = vsel %vm325, %v317, %v333
  %v342 = vsel %vm326, %v318, %v334
  %v343 = vsel %vm327, %v319, %v335
  %v344 = vsel %vm328, %v320, %v336
  %v345 = vsel %vm329, %v321, %v337
  %v346 = vsel %vm330, %v322, %v338
  %355 = vrot.lane.b32.xlu0 %v226, 8
  %v356 = vpop.permute.xlu0 %355
  %357 = vrot.lane.b32.xlu0 %v228, 8
  %v358 = vpop.permute.xlu0 %357
  %359 = vrot.lane.b32.xlu0 %v230, 8
  %v360 = vpop.permute.xlu0 %359
  %361 = vrot.lane.b32.xlu0 %v232, 8
  %v362 = vpop.permute.xlu0 %361
  %363 = vrot.lane.b32.xlu0 %v234, 8
  %v364 = vpop.permute.xlu0 %363
  %365 = vrot.lane.b32.xlu0 %v236, 8
  %v366 = vpop.permute.xlu0 %365
  %367 = vrot.lane.b32.xlu0 %v238, 8
  %v368 = vpop.permute.xlu0 %367
  %369 = vrot.lane.b32.xlu0 %v240, 8
  %v370 = vpop.permute.xlu0 %369
  %v379 = vadd.f32 %v339, %v356
  %v380 = vadd.f32 %v340, %v358
  %v381 = vadd.f32 %v341, %v360
  %v382 = vadd.f32 %v342, %v362
  %v383 = vadd.f32 %v343, %v364
  %v384 = vadd.f32 %v344, %v366
  %v385 = vadd.f32 %v345, %v368
  %v386 = vadd.f32 %v346, %v370
  %vm387 = vcmask 72768
  %v388 = vsel %vm387, %v379, -inf
  %v389 = vrot.slane %v388, 4
  %v390 = vmax.f32 %v388, %v389
  %v391 = vrot.slane %v390, 2
  %v392 = vmax.f32 %v390, %v391
  %v393 = vrot.slane %v392, 1
  %v394 = vmax.f32 %v392, %v393
  %v395 = vsel %vm387, %v380, -inf
  %v396 = vrot.slane %v395, 4
  %v397 = vmax.f32 %v395, %v396
  %v398 = vrot.slane %v397, 2
  %v399 = vmax.f32 %v397, %v398
  %v400 = vrot.slane %v399, 1
  %v401 = vmax.f32 %v399, %v400
  %v402 = vsel %vm387, %v381, -inf
  %v403 = vrot.slane %v402, 4
  %v404 = vmax.f32 %v402, %v403
  %v405 = vrot.slane %v404, 2
  %v406 = vmax.f32 %v404, %v405
  %v407 = vrot.slane %v406, 1
  %v408 = vmax.f32 %v406, %v407
  %v409 = vsel %vm387, %v382, -inf
  %v410 = vrot.slane %v409, 4
  %v411 = vmax.f32 %v409, %v410
  %v412 = vrot.slane %v411, 2
  %v413 = vmax.f32 %v411, %v412
  %v414 = vrot.slane %v413, 1
  %v415 = vmax.f32 %v413, %v414
  %v416 = vsel %vm387, %v383, -inf
  %v417 = vrot.slane %v416, 4
  %v418 = vmax.f32 %v416, %v417
  %v419 = vrot.slane %v418, 2
  %v420 = vmax.f32 %v418, %v419
  %v421 = vrot.slane %v420, 1
  %v422 = vmax.f32 %v420, %v421
  %v423 = vsel %vm387, %v384, -inf
  %v424 = vrot.slane %v423, 4
  %v425 = vmax.f32 %v423, %v424
  %v426 = vrot.slane %v425, 2
  %v427 = vmax.f32 %v425, %v426
  %v428 = vrot.slane %v427, 1
  %v429 = vmax.f32 %v427, %v428
  %v430 = vsel %vm387, %v385, -inf
  %v431 = vrot.slane %v430, 4
  %v432 = vmax.f32 %v430, %v431
  %v433 = vrot.slane %v432, 2
  %v434 = vmax.f32 %v432, %v433
  %v435 = vrot.slane %v434, 1
  %v436 = vmax.f32 %v434, %v435
  %v437 = vsel %vm387, %v386, -inf
  %v438 = vrot.slane %v437, 4
  %v439 = vmax.f32 %v437, %v438
  %v440 = vrot.slane %v439, 2
  %v441 = vmax.f32 %v439, %v440
  %v442 = vrot.slane %v441, 1
  %v443 = vmax.f32 %v441, %v442
  %v444 = vsub.f32 %v379, %v394
  %v445 = vsub.f32 %v380, %v401
  %v446 = vsub.f32 %v381, %v408
  %v447 = vsub.f32 %v382, %v415
  %v448 = vsub.f32 %v383, %v422
  %v449 = vsub.f32 %v384, %v429
  %v450 = vsub.f32 %v385, %v436
  %v451 = vsub.f32 %v386, %v443
  %v452 = vmul.f32 %v444, 1.442695
  %v453 = vpow.pop %v452
  %v454 = vmul.f32 %v445, 1.442695
  %v455 = vpow.pop %v454
  %v456 = vmul.f32 %v446, 1.442695
  %v457 = vpow.pop %v456
  %v458 = vmul.f32 %v447, 1.442695
  %v459 = vpow.pop %v458
  %v460 = vmul.f32 %v448, 1.442695
  %v461 = vpow.pop %v460
  %v462 = vmul.f32 %v449, 1.442695
  %v463 = vpow.pop %v462
  %v464 = vmul.f32 %v450, 1.442695
  %v465 = vpow.pop %v464
  %v466 = vmul.f32 %v451, 1.442695
  %v467 = vpow.pop %v466
  %v468 = vsel %vm387, %v453, 0.0
  %v469 = vrot.slane %v468, 4
  %v470 = vadd.f32 %v468, %v469
  %v471 = vrot.slane %v470, 2
  %v472 = vadd.f32 %v470, %v471
  %v473 = vrot.slane %v472, 1
  %v474 = vadd.f32 %v472, %v473
  %v475 = vsel %vm387, %v455, 0.0
  %v476 = vrot.slane %v475, 4
  %v477 = vadd.f32 %v475, %v476
  %v478 = vrot.slane %v477, 2
  %v479 = vadd.f32 %v477, %v478
  %v480 = vrot.slane %v479, 1
  %v481 = vadd.f32 %v479, %v480
  %v482 = vsel %vm387, %v457, 0.0
  %v483 = vrot.slane %v482, 4
  %v484 = vadd.f32 %v482, %v483
  %v485 = vrot.slane %v484, 2
  %v486 = vadd.f32 %v484, %v485
  %v487 = vrot.slane %v486, 1
  %v488 = vadd.f32 %v486, %v487
  %v489 = vsel %vm387, %v459, 0.0
  %v490 = vrot.slane %v489, 4
  %v491 = vadd.f32 %v489, %v490
  %v492 = vrot.slane %v491, 2
  %v493 = vadd.f32 %v491, %v492
  %v494 = vrot.slane %v493, 1
  %v495 = vadd.f32 %v493, %v494
  %v496 = vsel %vm387, %v461, 0.0
  %v497 = vrot.slane %v496, 4
  %v498 = vadd.f32 %v496, %v497
  %v499 = vrot.slane %v498, 2
  %v500 = vadd.f32 %v498, %v499
  %v501 = vrot.slane %v500, 1
  %v502 = vadd.f32 %v500, %v501
  %v503 = vsel %vm387, %v463, 0.0
  %v504 = vrot.slane %v503, 4
  %v505 = vadd.f32 %v503, %v504
  %v506 = vrot.slane %v505, 2
  %v507 = vadd.f32 %v505, %v506
  %v508 = vrot.slane %v507, 1
  %v509 = vadd.f32 %v507, %v508
  %v510 = vsel %vm387, %v465, 0.0
  %v511 = vrot.slane %v510, 4
  %v512 = vadd.f32 %v510, %v511
  %v513 = vrot.slane %v512, 2
  %v514 = vadd.f32 %v512, %v513
  %v515 = vrot.slane %v514, 1
  %v516 = vadd.f32 %v514, %v515
  %v517 = vsel %vm387, %v467, 0.0
  %v518 = vrot.slane %v517, 4
  %v519 = vadd.f32 %v517, %v518
  %v520 = vrot.slane %v519, 2
  %v521 = vadd.f32 %v519, %v520
  %v522 = vrot.slane %v521, 1
  %v523 = vadd.f32 %v521, %v522
  %525 = vset.pattern.permute.xlu0 8
  %526 = vperm.xlu0 %525, %v453
  %v527 = vpop.permute.xlu0 %526
  %530 = vset.pattern.permute.xlu0 8
  %531 = vperm.xlu0 %530, %v455
  %v532 = vpop.permute.xlu0 %531
  %535 = vset.pattern.permute.xlu0 8
  %536 = vperm.xlu0 %535, %v457
  %v537 = vpop.permute.xlu0 %536
  %540 = vset.pattern.permute.xlu0 8
  %541 = vperm.xlu0 %540, %v459
  %v542 = vpop.permute.xlu0 %541
  %545 = vset.pattern.permute.xlu0 8
  %546 = vperm.xlu0 %545, %v461
  %v547 = vpop.permute.xlu0 %546
  %550 = vset.pattern.permute.xlu0 8
  %551 = vperm.xlu0 %550, %v463
  %v552 = vpop.permute.xlu0 %551
  %555 = vset.pattern.permute.xlu0 8
  %556 = vperm.xlu0 %555, %v465
  %v557 = vpop.permute.xlu0 %556
  %560 = vset.pattern.permute.xlu0 8
  %561 = vperm.xlu0 %560, %v467
  %v562 = vpop.permute.xlu0 %561
  %v564 = vmul.f32 %v527, %v187
  %v565 = vmul.f32 %v532, %v192
  %v566 = vmul.f32 %v537, %v197
  %v567 = vmul.f32 %v542, %v202
  %v568 = vmul.f32 %v547, %v207
  %v569 = vmul.f32 %v552, %v212
  %v570 = vmul.f32 %v557, %v217
  %v571 = vmul.f32 %v562, %v222
  %vm572 = vcmask 64512
  %v573 = vsel %vm572, %v564, 0.0
  %v574 = vrot.slane %v573, 4
  %v575 = vadd.f32 %v573, %v574
  %v576 = vrot.slane %v575, 2
  %v577 = vadd.f32 %v575, %v576
  %v578 = vrot.slane %v577, 1
  %v579 = vadd.f32 %v577, %v578
  %v580 = vsel %vm572, %v565, 0.0
  %v581 = vrot.slane %v580, 4
  %v582 = vadd.f32 %v580, %v581
  %v583 = vrot.slane %v582, 2
  %v584 = vadd.f32 %v582, %v583
  %v585 = vrot.slane %v584, 1
  %v586 = vadd.f32 %v584, %v585
  %v587 = vsel %vm572, %v566, 0.0
  %v588 = vrot.slane %v587, 4
  %v589 = vadd.f32 %v587, %v588
  %v590 = vrot.slane %v589, 2
  %v591 = vadd.f32 %v589, %v590
  %v592 = vrot.slane %v591, 1
  %v593 = vadd.f32 %v591, %v592
  %v594 = vsel %vm572, %v567, 0.0
  %v595 = vrot.slane %v594, 4
  %v596 = vadd.f32 %v594, %v595
  %v597 = vrot.slane %v596, 2
  %v598 = vadd.f32 %v596, %v597
  %v599 = vrot.slane %v598, 1
  %v600 = vadd.f32 %v598, %v599
  %v601 = vsel %vm572, %v568, 0.0
  %v602 = vrot.slane %v601, 4
  %v603 = vadd.f32 %v601, %v602
  %v604 = vrot.slane %v603, 2
  %v605 = vadd.f32 %v603, %v604
  %v606 = vrot.slane %v605, 1
  %v607 = vadd.f32 %v605, %v606
  %v608 = vsel %vm572, %v569, 0.0
  %v609 = vrot.slane %v608, 4
  %v610 = vadd.f32 %v608, %v609
  %v611 = vrot.slane %v610, 2
  %v612 = vadd.f32 %v610, %v611
  %v613 = vrot.slane %v612, 1
  %v614 = vadd.f32 %v612, %v613
  %v615 = vsel %vm572, %v570, 0.0
  %v616 = vrot.slane %v615, 4
  %v617 = vadd.f32 %v615, %v616
  %v618 = vrot.slane %v617, 2
  %v619 = vadd.f32 %v617, %v618
  %v620 = vrot.slane %v619, 1
  %v621 = vadd.f32 %v619, %v620
  %v622 = vsel %vm572, %v571, 0.0
  %v623 = vrot.slane %v622, 4
  %v624 = vadd.f32 %v622, %v623
  %v625 = vrot.slane %v624, 2
  %v626 = vadd.f32 %v624, %v625
  %v627 = vrot.slane %v626, 1
  %v628 = vadd.f32 %v626, %v627
  %630 = vset.pattern.permute.xlu0 8
  %631 = vperm.xlu0 %630, %v474
  %v632 = vpop.permute.xlu0 %631
  %635 = vset.pattern.permute.xlu0 8
  %636 = vperm.xlu0 %635, %v481
  %v637 = vpop.permute.xlu0 %636
  %640 = vset.pattern.permute.xlu0 8
  %641 = vperm.xlu0 %640, %v488
  %v642 = vpop.permute.xlu0 %641
  %645 = vset.pattern.permute.xlu0 8
  %646 = vperm.xlu0 %645, %v495
  %v647 = vpop.permute.xlu0 %646
  %650 = vset.pattern.permute.xlu0 8
  %651 = vperm.xlu0 %650, %v502
  %v652 = vpop.permute.xlu0 %651
  %655 = vset.pattern.permute.xlu0 8
  %656 = vperm.xlu0 %655, %v509
  %v657 = vpop.permute.xlu0 %656
  %660 = vset.pattern.permute.xlu0 8
  %661 = vperm.xlu0 %660, %v516
  %v662 = vpop.permute.xlu0 %661
  %665 = vset.pattern.permute.xlu0 8
  %666 = vperm.xlu0 %665, %v523
  %v667 = vpop.permute.xlu0 %666
  %v669 = vrcp.pop %v632
  %v670 = vmul.f32 %v632, %v669
  %v671 = vsub.f32 1.0, %v670
  %v672 = vmul.f32 %v669, %v671
  %v673 = vadd.f32 %v669, %v672
  %vm674 = vweird.f32 %v632
  %vm675 = vweird.f32 %v669
  %vm676 = vmor %vm674, %vm675
  %v677 = vsel %vm676, %v669, %v673
  %v678 = vand.u32 2147483647, %v632
  %vm679 = vcmp.eq.f32.partialorder %v678, 8.507059e+37
  %v680 = vand.u32 %v632, 2147483648
  %v681 = vor.u32 1.1754944e-38, %v680
  %v682 = vsel %vm679, %v681, %v677
  %v683 = vmul.f32 %v579, %v682
  %v684 = vrcp.pop %v637
  %v685 = vmul.f32 %v637, %v684
  %v686 = vsub.f32 1.0, %v685
  %v687 = vmul.f32 %v684, %v686
  %v688 = vadd.f32 %v684, %v687
  %vm689 = vweird.f32 %v637
  %vm690 = vweird.f32 %v684
  %vm691 = vmor %vm689, %vm690
  %v692 = vsel %vm691, %v684, %v688
  %v693 = vand.u32 2147483647, %v637
  %vm694 = vcmp.eq.f32.partialorder %v693, 8.507059e+37
  %v695 = vand.u32 %v637, 2147483648
  %v696 = vor.u32 1.1754944e-38, %v695
  %v697 = vsel %vm694, %v696, %v692
  %v698 = vmul.f32 %v586, %v697
  %v699 = vrcp.pop %v642
  %v700 = vmul.f32 %v642, %v699
  %v701 = vsub.f32 1.0, %v700
  %v702 = vmul.f32 %v699, %v701
  %v703 = vadd.f32 %v699, %v702
  %vm704 = vweird.f32 %v642
  %vm705 = vweird.f32 %v699
  %vm706 = vmor %vm704, %vm705
  %v707 = vsel %vm706, %v699, %v703
  %v708 = vand.u32 2147483647, %v642
  %vm709 = vcmp.eq.f32.partialorder %v708, 8.507059e+37
  %v710 = vand.u32 %v642, 2147483648
  %v711 = vor.u32 1.1754944e-38, %v710
  %v712 = vsel %vm709, %v711, %v707
  %v713 = vmul.f32 %v593, %v712
  %v714 = vrcp.pop %v647
  %v715 = vmul.f32 %v647, %v714
  %v716 = vsub.f32 1.0, %v715
  %v717 = vmul.f32 %v714, %v716
  %v718 = vadd.f32 %v714, %v717
  %vm719 = vweird.f32 %v647
  %vm720 = vweird.f32 %v714
  %vm721 = vmor %vm719, %vm720
  %v722 = vsel %vm721, %v714, %v718
  %v723 = vand.u32 2147483647, %v647
  %vm724 = vcmp.eq.f32.partialorder %v723, 8.507059e+37
  %v725 = vand.u32 %v647, 2147483648
  %v726 = vor.u32 1.1754944e-38, %v725
  %v727 = vsel %vm724, %v726, %v722
  %v728 = vmul.f32 %v600, %v727
  %v729 = vrcp.pop %v652
  %v730 = vmul.f32 %v652, %v729
  %v731 = vsub.f32 1.0, %v730
  %v732 = vmul.f32 %v729, %v731
  %v733 = vadd.f32 %v729, %v732
  %vm734 = vweird.f32 %v652
  %vm735 = vweird.f32 %v729
  %vm736 = vmor %vm734, %vm735
  %v737 = vsel %vm736, %v729, %v733
  %v738 = vand.u32 2147483647, %v652
  %vm739 = vcmp.eq.f32.partialorder %v738, 8.507059e+37
  %v740 = vand.u32 %v652, 2147483648
  %v741 = vor.u32 1.1754944e-38, %v740
  %v742 = vsel %vm739, %v741, %v737
  %v743 = vmul.f32 %v607, %v742
  %v744 = vrcp.pop %v657
  %v745 = vmul.f32 %v657, %v744
  %v746 = vsub.f32 1.0, %v745
  %v747 = vmul.f32 %v744, %v746
  %v748 = vadd.f32 %v744, %v747
  %vm749 = vweird.f32 %v657
  %vm750 = vweird.f32 %v744
  %vm751 = vmor %vm749, %vm750
  %v752 = vsel %vm751, %v744, %v748
  %v753 = vand.u32 2147483647, %v657
  %vm754 = vcmp.eq.f32.partialorder %v753, 8.507059e+37
  %v755 = vand.u32 %v657, 2147483648
  %v756 = vor.u32 1.1754944e-38, %v755
  %v757 = vsel %vm754, %v756, %v752
  %v758 = vmul.f32 %v614, %v757
  %v759 = vrcp.pop %v662
  %v760 = vmul.f32 %v662, %v759
  %v761 = vsub.f32 1.0, %v760
  %v762 = vmul.f32 %v759, %v761
  %v763 = vadd.f32 %v759, %v762
  %vm764 = vweird.f32 %v662
  %vm765 = vweird.f32 %v759
  %vm766 = vmor %vm764, %vm765
  %v767 = vsel %vm766, %v759, %v763
  %v768 = vand.u32 2147483647, %v662
  %vm769 = vcmp.eq.f32.partialorder %v768, 8.507059e+37
  %v770 = vand.u32 %v662, 2147483648
  %v771 = vor.u32 1.1754944e-38, %v770
  %v772 = vsel %vm769, %v771, %v767
  %v773 = vmul.f32 %v621, %v772
  %v774 = vrcp.pop %v667
  %v775 = vmul.f32 %v667, %v774
  %v776 = vsub.f32 1.0, %v775
  %v777 = vmul.f32 %v774, %v776
  %v778 = vadd.f32 %v774, %v777
  %vm779 = vweird.f32 %v667
  %vm780 = vweird.f32 %v774
  %vm781 = vmor %vm779, %vm780
  %v782 = vsel %vm781, %v774, %v778
  %v783 = vand.u32 2147483647, %v667
  %vm784 = vcmp.eq.f32.partialorder %v783, 8.507059e+37
  %v785 = vand.u32 %v667, 2147483648
  %v786 = vor.u32 1.1754944e-38, %v785
  %v787 = vsel %vm784, %v786, %v782
  %v788 = vmul.f32 %v628, %v787
  %v797 = vmul.f32 %v683, %v256
  %v798 = vmul.f32 %v698, %v260
  %v799 = vmul.f32 %v713, %v261
  %v800 = vmul.f32 %v728, %v262
  %v801 = vmul.f32 %v743, %v263
  %v802 = vmul.f32 %v758, %v264
  %v803 = vmul.f32 %v773, %v265
  %v804 = vmul.f32 %v788, %v266
  %v805 = vmax.f32 %v797, 0.0
  %v806 = vmax.f32 %v798, 0.0
  %v807 = vmax.f32 %v799, 0.0
  %v808 = vmax.f32 %v800, 0.0
  %v809 = vmax.f32 %v801, 0.0
  %v810 = vmax.f32 %v802, 0.0
  %v811 = vmax.f32 %v803, 0.0
  %v812 = vmax.f32 %v804, 0.0
  %v821 = vrot.slane %v806, 7
  %vm822 = vcmask 1041409
  %v823 = vsel %vm822, %v821, %v805
  %v824 = vrot.slane %v807, 6
  %vm825 = vcmask 1042434
  %v826 = vsel %vm825, %v824, %v823
  %v827 = vrot.slane %v808, 5
  %vm828 = vcmask 1043459
  %v829 = vsel %vm828, %v827, %v826
  %v830 = vrot.slane %v809, 4
  %vm831 = vcmask 1044484
  %v832 = vsel %vm831, %v830, %v829
  %v833 = vrot.slane %v810, 3
  %vm834 = vcmask 1045509
  %v835 = vsel %vm834, %v833, %v832
  %v836 = vrot.slane %v811, 2
  %vm837 = vcmask 1046534
  %v838 = vsel %vm837, %v836, %v835
  %v839 = vrot.slane %v812, 1
  %vm840 = vcmask 1047559
  %v841 = vsel %vm840, %v839, %v838
  %v842 = vsel %vm572, %v841, 0
  %844 = vmatpush.msra.mxu0 0.0
  %845 = vmatpush.msra.mxu0 0.0
  %846 = vmatpush.msra.mxu0 0.0
  %847 = vmatpush.msra.mxu0 0.0
  %848 = vmatpush.msra.mxu0 0.0
  %849 = vmatpush.msra.mxu0 0.0
  %850 = vmatpush.msra.mxu0 0.0
  %851 = vmatpush.msra.mxu0 0.0
  %852 = vmatpush.msra.mxu0 0.0
  %853 = vmatpush.msra.mxu0 0.0
  %854 = vmatpush.msra.mxu0 0.0
  %855 = vmatpush.msra.mxu0 0.0
  %856 = vmatpush.msra.mxu0 0.0
  %857 = vmatpush.msra.mxu0 0.0
  %858 = vmatpush.msra.mxu0 0.0
  %859 = vmatpush.msra.mxu0 %v39
  %860 = vmatmul.f32.gmra.mxu0 %v842
  %v861 = vpop.f32.mrf.mxu0
  %v862 = vadd.f32 0.0, %v861
  %863 = vdwg.mxu0
  %v864 = vadd.f32 %v83, %v862
  %s865 = scalar_lea.vmem %s2, 4
  %v866 = vld [vmem:[%s865] sm:$0xf]
  %v868 = vsel %vm65, %v866, 0
  %870 = vmatpush.bf16.msra.mxu0 0
  %871 = vmatpush.bf16.msra.mxu0 0
  %872 = vmatpush.bf16.msra.mxu0 0
  %873 = vmatpush.bf16.msra.mxu0 0
  %874 = vmatpush.bf16.msra.mxu0 0
  %875 = vmatpush.bf16.msra.mxu0 0
  %876 = vmatpush.bf16.msra.mxu0 %v150
  %877 = vmatpush.bf16.msra.mxu0 %v149
  %878 = vmatmul.bf16.gmra.mxu0 %v868
  %v879 = vpop.f32.mrf.mxu0
  %v880 = vadd.f32 %v100, %v879
  %v881 = vpop.f32.mrf.mxu0
  %882 = vdwg.mxu0
  %v884 = vrot.slane %v880, 1
  %v885 = vrot.slane %v880, 2
  %v886 = vrot.slane %v880, 3
  %v887 = vrot.slane %v880, 4
  %v888 = vrot.slane %v880, 5
  %v889 = vrot.slane %v880, 6
  %v890 = vrot.slane %v880, 7
  %v891 = vperm.slane %v880, 0
  %v892 = vperm.slane %v884, 0
  %v893 = vperm.slane %v885, 0
  %v894 = vperm.slane %v886, 0
  %v895 = vperm.slane %v887, 0
  %v896 = vperm.slane %v888, 0
  %v897 = vperm.slane %v889, 0
  %v898 = vperm.slane %v890, 0
  %915 = vrot.lane.b32.xlu0 %v189, 127
  %v916 = vpop.permute.xlu0 %915
  %917 = vrot.lane.b32.xlu0 %v194, 127
  %v918 = vpop.permute.xlu0 %917
  %919 = vrot.lane.b32.xlu0 %v199, 127
  %v920 = vpop.permute.xlu0 %919
  %921 = vrot.lane.b32.xlu0 %v204, 127
  %v922 = vpop.permute.xlu0 %921
  %923 = vrot.lane.b32.xlu0 %v209, 127
  %v924 = vpop.permute.xlu0 %923
  %925 = vrot.lane.b32.xlu0 %v214, 127
  %v926 = vpop.permute.xlu0 %925
  %927 = vrot.lane.b32.xlu0 %v219, 127
  %v928 = vpop.permute.xlu0 %927
  %929 = vrot.lane.b32.xlu0 %v224, 127
  %v930 = vpop.permute.xlu0 %929
  %v939 = vadd.f32 %v891, %v916
  %v940 = vadd.f32 %v892, %v918
  %v941 = vadd.f32 %v893, %v920
  %v942 = vadd.f32 %v894, %v922
  %v943 = vadd.f32 %v895, %v924
  %v944 = vadd.f32 %v896, %v926
  %v945 = vadd.f32 %v897, %v928
  %v946 = vadd.f32 %v898, %v930
  %vm947 = vcmp.gt.f32.partialorder %v939, 0.0
  %vm948 = vcmp.gt.f32.partialorder %v940, 0.0
  %vm949 = vcmp.gt.f32.partialorder %v941, 0.0
  %vm950 = vcmp.gt.f32.partialorder %v942, 0.0
  %vm951 = vcmp.gt.f32.partialorder %v943, 0.0
  %vm952 = vcmp.gt.f32.partialorder %v944, 0.0
  %vm953 = vcmp.gt.f32.partialorder %v945, 0.0
  %vm954 = vcmp.gt.f32.partialorder %v946, 0.0
  %v955 = vmul.f32 %v939, 0.01
  %v956 = vmul.f32 %v940, 0.01
  %v957 = vmul.f32 %v941, 0.01
  %v958 = vmul.f32 %v942, 0.01
  %v959 = vmul.f32 %v943, 0.01
  %v960 = vmul.f32 %v944, 0.01
  %v961 = vmul.f32 %v945, 0.01
  %v962 = vmul.f32 %v946, 0.01
  %v963 = vsel %vm947, %v939, %v955
  %v964 = vsel %vm948, %v940, %v956
  %v965 = vsel %vm949, %v941, %v957
  %v966 = vsel %vm950, %v942, %v958
  %v967 = vsel %vm951, %v943, %v959
  %v968 = vsel %vm952, %v944, %v960
  %v969 = vsel %vm953, %v945, %v961
  %v970 = vsel %vm954, %v946, %v962
  %979 = vrot.lane.b32.xlu0 %v227, 8
  %v980 = vpop.permute.xlu0 %979
  %981 = vrot.lane.b32.xlu0 %v229, 8
  %v982 = vpop.permute.xlu0 %981
  %983 = vrot.lane.b32.xlu0 %v231, 8
  %v984 = vpop.permute.xlu0 %983
  %985 = vrot.lane.b32.xlu0 %v233, 8
  %v986 = vpop.permute.xlu0 %985
  %987 = vrot.lane.b32.xlu0 %v235, 8
  %v988 = vpop.permute.xlu0 %987
  %989 = vrot.lane.b32.xlu0 %v237, 8
  %v990 = vpop.permute.xlu0 %989
  %991 = vrot.lane.b32.xlu0 %v239, 8
  %v992 = vpop.permute.xlu0 %991
  %993 = vrot.lane.b32.xlu0 %v241, 8
  %v994 = vpop.permute.xlu0 %993
  %v1003 = vadd.f32 %v963, %v980
  %v1004 = vadd.f32 %v964, %v982
  %v1005 = vadd.f32 %v965, %v984
  %v1006 = vadd.f32 %v966, %v986
  %v1007 = vadd.f32 %v967, %v988
  %v1008 = vadd.f32 %v968, %v990
  %v1009 = vadd.f32 %v969, %v992
  %v1010 = vadd.f32 %v970, %v994
  %v1011 = vsel %vm387, %v1003, -inf
  %v1012 = vrot.slane %v1011, 4
  %v1013 = vmax.f32 %v1011, %v1012
  %v1014 = vrot.slane %v1013, 2
  %v1015 = vmax.f32 %v1013, %v1014
  %v1016 = vrot.slane %v1015, 1
  %v1017 = vmax.f32 %v1015, %v1016
  %v1018 = vsel %vm387, %v1004, -inf
  %v1019 = vrot.slane %v1018, 4
  %v1020 = vmax.f32 %v1018, %v1019
  %v1021 = vrot.slane %v1020, 2
  %v1022 = vmax.f32 %v1020, %v1021
  %v1023 = vrot.slane %v1022, 1
  %v1024 = vmax.f32 %v1022, %v1023
  %v1025 = vsel %vm387, %v1005, -inf
  %v1026 = vrot.slane %v1025, 4
  %v1027 = vmax.f32 %v1025, %v1026
  %v1028 = vrot.slane %v1027, 2
  %v1029 = vmax.f32 %v1027, %v1028
  %v1030 = vrot.slane %v1029, 1
  %v1031 = vmax.f32 %v1029, %v1030
  %v1032 = vsel %vm387, %v1006, -inf
  %v1033 = vrot.slane %v1032, 4
  %v1034 = vmax.f32 %v1032, %v1033
  %v1035 = vrot.slane %v1034, 2
  %v1036 = vmax.f32 %v1034, %v1035
  %v1037 = vrot.slane %v1036, 1
  %v1038 = vmax.f32 %v1036, %v1037
  %v1039 = vsel %vm387, %v1007, -inf
  %v1040 = vrot.slane %v1039, 4
  %v1041 = vmax.f32 %v1039, %v1040
  %v1042 = vrot.slane %v1041, 2
  %v1043 = vmax.f32 %v1041, %v1042
  %v1044 = vrot.slane %v1043, 1
  %v1045 = vmax.f32 %v1043, %v1044
  %v1046 = vsel %vm387, %v1008, -inf
  %v1047 = vrot.slane %v1046, 4
  %v1048 = vmax.f32 %v1046, %v1047
  %v1049 = vrot.slane %v1048, 2
  %v1050 = vmax.f32 %v1048, %v1049
  %v1051 = vrot.slane %v1050, 1
  %v1052 = vmax.f32 %v1050, %v1051
  %v1053 = vsel %vm387, %v1009, -inf
  %v1054 = vrot.slane %v1053, 4
  %v1055 = vmax.f32 %v1053, %v1054
  %v1056 = vrot.slane %v1055, 2
  %v1057 = vmax.f32 %v1055, %v1056
  %v1058 = vrot.slane %v1057, 1
  %v1059 = vmax.f32 %v1057, %v1058
  %v1060 = vsel %vm387, %v1010, -inf
  %v1061 = vrot.slane %v1060, 4
  %v1062 = vmax.f32 %v1060, %v1061
  %v1063 = vrot.slane %v1062, 2
  %v1064 = vmax.f32 %v1062, %v1063
  %v1065 = vrot.slane %v1064, 1
  %v1066 = vmax.f32 %v1064, %v1065
  %v1067 = vsub.f32 %v1003, %v1017
  %v1068 = vsub.f32 %v1004, %v1024
  %v1069 = vsub.f32 %v1005, %v1031
  %v1070 = vsub.f32 %v1006, %v1038
  %v1071 = vsub.f32 %v1007, %v1045
  %v1072 = vsub.f32 %v1008, %v1052
  %v1073 = vsub.f32 %v1009, %v1059
  %v1074 = vsub.f32 %v1010, %v1066
  %v1075 = vmul.f32 %v1067, 1.442695
  %v1076 = vpow.pop %v1075
  %v1077 = vmul.f32 %v1068, 1.442695
  %v1078 = vpow.pop %v1077
  %v1079 = vmul.f32 %v1069, 1.442695
  %v1080 = vpow.pop %v1079
  %v1081 = vmul.f32 %v1070, 1.442695
  %v1082 = vpow.pop %v1081
  %v1083 = vmul.f32 %v1071, 1.442695
  %v1084 = vpow.pop %v1083
  %v1085 = vmul.f32 %v1072, 1.442695
  %v1086 = vpow.pop %v1085
  %v1087 = vmul.f32 %v1073, 1.442695
  %v1088 = vpow.pop %v1087
  %v1089 = vmul.f32 %v1074, 1.442695
  %v1090 = vpow.pop %v1089
  %v1091 = vsel %vm387, %v1076, 0.0
  %v1092 = vrot.slane %v1091, 4
  %v1093 = vadd.f32 %v1091, %v1092
  %v1094 = vrot.slane %v1093, 2
  %v1095 = vadd.f32 %v1093, %v1094
  %v1096 = vrot.slane %v1095, 1
  %v1097 = vadd.f32 %v1095, %v1096
  %v1098 = vsel %vm387, %v1078, 0.0
  %v1099 = vrot.slane %v1098, 4
  %v1100 = vadd.f32 %v1098, %v1099
  %v1101 = vrot.slane %v1100, 2
  %v1102 = vadd.f32 %v1100, %v1101
  %v1103 = vrot.slane %v1102, 1
  %v1104 = vadd.f32 %v1102, %v1103
  %v1105 = vsel %vm387, %v1080, 0.0
  %v1106 = vrot.slane %v1105, 4
  %v1107 = vadd.f32 %v1105, %v1106
  %v1108 = vrot.slane %v1107, 2
  %v1109 = vadd.f32 %v1107, %v1108
  %v1110 = vrot.slane %v1109, 1
  %v1111 = vadd.f32 %v1109, %v1110
  %v1112 = vsel %vm387, %v1082, 0.0
  %v1113 = vrot.slane %v1112, 4
  %v1114 = vadd.f32 %v1112, %v1113
  %v1115 = vrot.slane %v1114, 2
  %v1116 = vadd.f32 %v1114, %v1115
  %v1117 = vrot.slane %v1116, 1
  %v1118 = vadd.f32 %v1116, %v1117
  %v1119 = vsel %vm387, %v1084, 0.0
  %v1120 = vrot.slane %v1119, 4
  %v1121 = vadd.f32 %v1119, %v1120
  %v1122 = vrot.slane %v1121, 2
  %v1123 = vadd.f32 %v1121, %v1122
  %v1124 = vrot.slane %v1123, 1
  %v1125 = vadd.f32 %v1123, %v1124
  %v1126 = vsel %vm387, %v1086, 0.0
  %v1127 = vrot.slane %v1126, 4
  %v1128 = vadd.f32 %v1126, %v1127
  %v1129 = vrot.slane %v1128, 2
  %v1130 = vadd.f32 %v1128, %v1129
  %v1131 = vrot.slane %v1130, 1
  %v1132 = vadd.f32 %v1130, %v1131
  %v1133 = vsel %vm387, %v1088, 0.0
  %v1134 = vrot.slane %v1133, 4
  %v1135 = vadd.f32 %v1133, %v1134
  %v1136 = vrot.slane %v1135, 2
  %v1137 = vadd.f32 %v1135, %v1136
  %v1138 = vrot.slane %v1137, 1
  %v1139 = vadd.f32 %v1137, %v1138
  %v1140 = vsel %vm387, %v1090, 0.0
  %v1141 = vrot.slane %v1140, 4
  %v1142 = vadd.f32 %v1140, %v1141
  %v1143 = vrot.slane %v1142, 2
  %v1144 = vadd.f32 %v1142, %v1143
  %v1145 = vrot.slane %v1144, 1
  %v1146 = vadd.f32 %v1144, %v1145
  %1148 = vset.pattern.permute.xlu0 8
  %1149 = vperm.xlu0 %1148, %v1076
  %v1150 = vpop.permute.xlu0 %1149
  %1153 = vset.pattern.permute.xlu0 8
  %1154 = vperm.xlu0 %1153, %v1078
  %v1155 = vpop.permute.xlu0 %1154
  %1158 = vset.pattern.permute.xlu0 8
  %1159 = vperm.xlu0 %1158, %v1080
  %v1160 = vpop.permute.xlu0 %1159
  %1163 = vset.pattern.permute.xlu0 8
  %1164 = vperm.xlu0 %1163, %v1082
  %v1165 = vpop.permute.xlu0 %1164
  %1168 = vset.pattern.permute.xlu0 8
  %1169 = vperm.xlu0 %1168, %v1084
  %v1170 = vpop.permute.xlu0 %1169
  %1173 = vset.pattern.permute.xlu0 8
  %1174 = vperm.xlu0 %1173, %v1086
  %v1175 = vpop.permute.xlu0 %1174
  %1178 = vset.pattern.permute.xlu0 8
  %1179 = vperm.xlu0 %1178, %v1088
  %v1180 = vpop.permute.xlu0 %1179
  %1183 = vset.pattern.permute.xlu0 8
  %1184 = vperm.xlu0 %1183, %v1090
  %v1185 = vpop.permute.xlu0 %1184
  %v1187 = vmul.f32 %v1150, %v189
  %v1188 = vmul.f32 %v1155, %v194
  %v1189 = vmul.f32 %v1160, %v199
  %v1190 = vmul.f32 %v1165, %v204
  %v1191 = vmul.f32 %v1170, %v209
  %v1192 = vmul.f32 %v1175, %v214
  %v1193 = vmul.f32 %v1180, %v219
  %v1194 = vmul.f32 %v1185, %v224
  %v1195 = vsel %vm572, %v1187, 0.0
  %v1196 = vrot.slane %v1195, 4
  %v1197 = vadd.f32 %v1195, %v1196
  %v1198 = vrot.slane %v1197, 2
  %v1199 = vadd.f32 %v1197, %v1198
  %v1200 = vrot.slane %v1199, 1
  %v1201 = vadd.f32 %v1199, %v1200
  %v1202 = vsel %vm572, %v1188, 0.0
  %v1203 = vrot.slane %v1202, 4
  %v1204 = vadd.f32 %v1202, %v1203
  %v1205 = vrot.slane %v1204, 2
  %v1206 = vadd.f32 %v1204, %v1205
  %v1207 = vrot.slane %v1206, 1
  %v1208 = vadd.f32 %v1206, %v1207
  %v1209 = vsel %vm572, %v1189, 0.0
  %v1210 = vrot.slane %v1209, 4
  %v1211 = vadd.f32 %v1209, %v1210
  %v1212 = vrot.slane %v1211, 2
  %v1213 = vadd.f32 %v1211, %v1212
  %v1214 = vrot.slane %v1213, 1
  %v1215 = vadd.f32 %v1213, %v1214
  %v1216 = vsel %vm572, %v1190, 0.0
  %v1217 = vrot.slane %v1216, 4
  %v1218 = vadd.f32 %v1216, %v1217
  %v1219 = vrot.slane %v1218, 2
  %v1220 = vadd.f32 %v1218, %v1219
  %v1221 = vrot.slane %v1220, 1
  %v1222 = vadd.f32 %v1220, %v1221
  %v1223 = vsel %vm572, %v1191, 0.0
  %v1224 = vrot.slane %v1223, 4
  %v1225 = vadd.f32 %v1223, %v1224
  %v1226 = vrot.slane %v1225, 2
  %v1227 = vadd.f32 %v1225, %v1226
  %v1228 = vrot.slane %v1227, 1
  %v1229 = vadd.f32 %v1227, %v1228
  %v1230 = vsel %vm572, %v1192, 0.0
  %v1231 = vrot.slane %v1230, 4
  %v1232 = vadd.f32 %v1230, %v1231
  %v1233 = vrot.slane %v1232, 2
  %v1234 = vadd.f32 %v1232, %v1233
  %v1235 = vrot.slane %v1234, 1
  %v1236 = vadd.f32 %v1234, %v1235
  %v1237 = vsel %vm572, %v1193, 0.0
  %v1238 = vrot.slane %v1237, 4
  %v1239 = vadd.f32 %v1237, %v1238
  %v1240 = vrot.slane %v1239, 2
  %v1241 = vadd.f32 %v1239, %v1240
  %v1242 = vrot.slane %v1241, 1
  %v1243 = vadd.f32 %v1241, %v1242
  %v1244 = vsel %vm572, %v1194, 0.0
  %v1245 = vrot.slane %v1244, 4
  %v1246 = vadd.f32 %v1244, %v1245
  %v1247 = vrot.slane %v1246, 2
  %v1248 = vadd.f32 %v1246, %v1247
  %v1249 = vrot.slane %v1248, 1
  %v1250 = vadd.f32 %v1248, %v1249
  %1252 = vset.pattern.permute.xlu0 8
  %1253 = vperm.xlu0 %1252, %v1097
  %v1254 = vpop.permute.xlu0 %1253
  %1257 = vset.pattern.permute.xlu0 8
  %1258 = vperm.xlu0 %1257, %v1104
  %v1259 = vpop.permute.xlu0 %1258
  %1262 = vset.pattern.permute.xlu0 8
  %1263 = vperm.xlu0 %1262, %v1111
  %v1264 = vpop.permute.xlu0 %1263
  %1267 = vset.pattern.permute.xlu0 8
  %1268 = vperm.xlu0 %1267, %v1118
  %v1269 = vpop.permute.xlu0 %1268
  %1272 = vset.pattern.permute.xlu0 8
  %1273 = vperm.xlu0 %1272, %v1125
  %v1274 = vpop.permute.xlu0 %1273
  %1277 = vset.pattern.permute.xlu0 8
  %1278 = vperm.xlu0 %1277, %v1132
  %v1279 = vpop.permute.xlu0 %1278
  %1282 = vset.pattern.permute.xlu0 8
  %1283 = vperm.xlu0 %1282, %v1139
  %v1284 = vpop.permute.xlu0 %1283
  %1287 = vset.pattern.permute.xlu0 8
  %1288 = vperm.xlu0 %1287, %v1146
  %v1289 = vpop.permute.xlu0 %1288
  %v1291 = vrcp.pop %v1254
  %v1292 = vmul.f32 %v1254, %v1291
  %v1293 = vsub.f32 1.0, %v1292
  %v1294 = vmul.f32 %v1291, %v1293
  %v1295 = vadd.f32 %v1291, %v1294
  %vm1296 = vweird.f32 %v1254
  %vm1297 = vweird.f32 %v1291
  %vm1298 = vmor %vm1296, %vm1297
  %v1299 = vsel %vm1298, %v1291, %v1295
  %v1300 = vand.u32 2147483647, %v1254
  %vm1301 = vcmp.eq.f32.partialorder %v1300, 8.507059e+37
  %v1302 = vand.u32 %v1254, 2147483648
  %v1303 = vor.u32 1.1754944e-38, %v1302
  %v1304 = vsel %vm1301, %v1303, %v1299
  %v1305 = vmul.f32 %v1201, %v1304
  %v1306 = vrcp.pop %v1259
  %v1307 = vmul.f32 %v1259, %v1306
  %v1308 = vsub.f32 1.0, %v1307
  %v1309 = vmul.f32 %v1306, %v1308
  %v1310 = vadd.f32 %v1306, %v1309
  %vm1311 = vweird.f32 %v1259
  %vm1312 = vweird.f32 %v1306
  %vm1313 = vmor %vm1311, %vm1312
  %v1314 = vsel %vm1313, %v1306, %v1310
  %v1315 = vand.u32 2147483647, %v1259
  %vm1316 = vcmp.eq.f32.partialorder %v1315, 8.507059e+37
  %v1317 = vand.u32 %v1259, 2147483648
  %v1318 = vor.u32 1.1754944e-38, %v1317
  %v1319 = vsel %vm1316, %v1318, %v1314
  %v1320 = vmul.f32 %v1208, %v1319
  %v1321 = vrcp.pop %v1264
  %v1322 = vmul.f32 %v1264, %v1321
  %v1323 = vsub.f32 1.0, %v1322
  %v1324 = vmul.f32 %v1321, %v1323
  %v1325 = vadd.f32 %v1321, %v1324
  %vm1326 = vweird.f32 %v1264
  %vm1327 = vweird.f32 %v1321
  %vm1328 = vmor %vm1326, %vm1327
  %v1329 = vsel %vm1328, %v1321, %v1325
  %v1330 = vand.u32 2147483647, %v1264
  %vm1331 = vcmp.eq.f32.partialorder %v1330, 8.507059e+37
  %v1332 = vand.u32 %v1264, 2147483648
  %v1333 = vor.u32 1.1754944e-38, %v1332
  %v1334 = vsel %vm1331, %v1333, %v1329
  %v1335 = vmul.f32 %v1215, %v1334
  %v1336 = vrcp.pop %v1269
  %v1337 = vmul.f32 %v1269, %v1336
  %v1338 = vsub.f32 1.0, %v1337
  %v1339 = vmul.f32 %v1336, %v1338
  %v1340 = vadd.f32 %v1336, %v1339
  %vm1341 = vweird.f32 %v1269
  %vm1342 = vweird.f32 %v1336
  %vm1343 = vmor %vm1341, %vm1342
  %v1344 = vsel %vm1343, %v1336, %v1340
  %v1345 = vand.u32 2147483647, %v1269
  %vm1346 = vcmp.eq.f32.partialorder %v1345, 8.507059e+37
  %v1347 = vand.u32 %v1269, 2147483648
  %v1348 = vor.u32 1.1754944e-38, %v1347
  %v1349 = vsel %vm1346, %v1348, %v1344
  %v1350 = vmul.f32 %v1222, %v1349
  %v1351 = vrcp.pop %v1274
  %v1352 = vmul.f32 %v1274, %v1351
  %v1353 = vsub.f32 1.0, %v1352
  %v1354 = vmul.f32 %v1351, %v1353
  %v1355 = vadd.f32 %v1351, %v1354
  %vm1356 = vweird.f32 %v1274
  %vm1357 = vweird.f32 %v1351
  %vm1358 = vmor %vm1356, %vm1357
  %v1359 = vsel %vm1358, %v1351, %v1355
  %v1360 = vand.u32 2147483647, %v1274
  %vm1361 = vcmp.eq.f32.partialorder %v1360, 8.507059e+37
  %v1362 = vand.u32 %v1274, 2147483648
  %v1363 = vor.u32 1.1754944e-38, %v1362
  %v1364 = vsel %vm1361, %v1363, %v1359
  %v1365 = vmul.f32 %v1229, %v1364
  %v1366 = vrcp.pop %v1279
  %v1367 = vmul.f32 %v1279, %v1366
  %v1368 = vsub.f32 1.0, %v1367
  %v1369 = vmul.f32 %v1366, %v1368
  %v1370 = vadd.f32 %v1366, %v1369
  %vm1371 = vweird.f32 %v1279
  %vm1372 = vweird.f32 %v1366
  %vm1373 = vmor %vm1371, %vm1372
  %v1374 = vsel %vm1373, %v1366, %v1370
  %v1375 = vand.u32 2147483647, %v1279
  %vm1376 = vcmp.eq.f32.partialorder %v1375, 8.507059e+37
  %v1377 = vand.u32 %v1279, 2147483648
  %v1378 = vor.u32 1.1754944e-38, %v1377
  %v1379 = vsel %vm1376, %v1378, %v1374
  %v1380 = vmul.f32 %v1236, %v1379
  %v1381 = vrcp.pop %v1284
  %v1382 = vmul.f32 %v1284, %v1381
  %v1383 = vsub.f32 1.0, %v1382
  %v1384 = vmul.f32 %v1381, %v1383
  %v1385 = vadd.f32 %v1381, %v1384
  %vm1386 = vweird.f32 %v1284
  %vm1387 = vweird.f32 %v1381
  %vm1388 = vmor %vm1386, %vm1387
  %v1389 = vsel %vm1388, %v1381, %v1385
  %v1390 = vand.u32 2147483647, %v1284
  %vm1391 = vcmp.eq.f32.partialorder %v1390, 8.507059e+37
  %v1392 = vand.u32 %v1284, 2147483648
  %v1393 = vor.u32 1.1754944e-38, %v1392
  %v1394 = vsel %vm1391, %v1393, %v1389
  %v1395 = vmul.f32 %v1243, %v1394
  %v1396 = vrcp.pop %v1289
  %v1397 = vmul.f32 %v1289, %v1396
  %v1398 = vsub.f32 1.0, %v1397
  %v1399 = vmul.f32 %v1396, %v1398
  %v1400 = vadd.f32 %v1396, %v1399
  %vm1401 = vweird.f32 %v1289
  %vm1402 = vweird.f32 %v1396
  %vm1403 = vmor %vm1401, %vm1402
  %v1404 = vsel %vm1403, %v1396, %v1400
  %v1405 = vand.u32 2147483647, %v1289
  %vm1406 = vcmp.eq.f32.partialorder %v1405, 8.507059e+37
  %v1407 = vand.u32 %v1289, 2147483648
  %v1408 = vor.u32 1.1754944e-38, %v1407
  %v1409 = vsel %vm1406, %v1408, %v1404
  %v1410 = vmul.f32 %v1250, %v1409
  %v1419 = vmul.f32 %v1305, %v880
  %v1420 = vmul.f32 %v1320, %v884
  %v1421 = vmul.f32 %v1335, %v885
  %v1422 = vmul.f32 %v1350, %v886
  %v1423 = vmul.f32 %v1365, %v887
  %v1424 = vmul.f32 %v1380, %v888
  %v1425 = vmul.f32 %v1395, %v889
  %v1426 = vmul.f32 %v1410, %v890
  %v1427 = vmax.f32 %v1419, 0.0
  %v1428 = vmax.f32 %v1420, 0.0
  %v1429 = vmax.f32 %v1421, 0.0
  %v1430 = vmax.f32 %v1422, 0.0
  %v1431 = vmax.f32 %v1423, 0.0
  %v1432 = vmax.f32 %v1424, 0.0
  %v1433 = vmax.f32 %v1425, 0.0
  %v1434 = vmax.f32 %v1426, 0.0
  %v1443 = vrot.slane %v1428, 7
  %v1444 = vsel %vm822, %v1443, %v1427
  %v1445 = vrot.slane %v1429, 6
  %v1446 = vsel %vm825, %v1445, %v1444
  %v1447 = vrot.slane %v1430, 5
  %v1448 = vsel %vm828, %v1447, %v1446
  %v1449 = vrot.slane %v1431, 4
  %v1450 = vsel %vm831, %v1449, %v1448
  %v1451 = vrot.slane %v1432, 3
  %v1452 = vsel %vm834, %v1451, %v1450
  %v1453 = vrot.slane %v1433, 2
  %v1454 = vsel %vm837, %v1453, %v1452
  %v1455 = vrot.slane %v1434, 1
  %v1456 = vsel %vm840, %v1455, %v1454
  %v1457 = vsel %vm572, %v1456, 0
  %1459 = vmatpush.msra.mxu0 0.0
  %1460 = vmatpush.msra.mxu0 0.0
  %1461 = vmatpush.msra.mxu0 0.0
  %1462 = vmatpush.msra.mxu0 0.0
  %1463 = vmatpush.msra.mxu0 0.0
  %1464 = vmatpush.msra.mxu0 0.0
  %1465 = vmatpush.msra.mxu0 0.0
  %1466 = vmatpush.msra.mxu0 0.0
  %1467 = vmatpush.msra.mxu0 0.0
  %1468 = vmatpush.msra.mxu0 0.0
  %1469 = vmatpush.msra.mxu0 0.0
  %1470 = vmatpush.msra.mxu0 0.0
  %1471 = vmatpush.msra.mxu0 0.0
  %1472 = vmatpush.msra.mxu0 0.0
  %1473 = vmatpush.msra.mxu0 0.0
  %1474 = vmatpush.msra.mxu0 %v40
  %1475 = vmatmul.f32.gmra.mxu0 %v1457
  %v1476 = vpop.f32.mrf.mxu0
  %v1477 = vadd.f32 0.0, %v1476
  %1478 = vdwg.mxu0
  %v1479 = vadd.f32 %v864, %v1477
  %v1480 = vmul.f32 %v1479, 0.5
  %v1481 = vmul.f32 %v1479, 0.70710677
  %v1482 = vmul.f32 %v1481, %v1481
  %v1483 = vmin.f32 16.0, %v1482
  %v1484 = vmul.f32 %v1483, 2.1237322e-06
  %v1485 = vadd.f32 %v1484, 0.00028619796
  %v1486 = vmul.f32 %v1483, %v1485
  %v1487 = vadd.f32 %v1486, 0.0036580483
  %v1488 = vmul.f32 %v1483, %v1487
  %v1489 = vadd.f32 %v1488, 0.05243302
  %v1490 = vmul.f32 %v1483, %v1489
  %v1491 = vadd.f32 %v1490, 0.18741608
  %v1492 = vmul.f32 %v1483, %v1491
  %v1493 = vadd.f32 %v1492, 1.1283791
  %v1494 = vmul.f32 %v1481, %v1493
  %v1495 = vmul.f32 %v1483, 3.8918573e-05
  %v1496 = vadd.f32 %v1495, 0.001143296
  %v1497 = vmul.f32 %v1483, %v1496
  %v1498 = vadd.f32 %v1497, 0.014752088
  %v1499 = vmul.f32 %v1483, %v1498
  %v1500 = vadd.f32 %v1499, 0.112945676
  %v1501 = vmul.f32 %v1483, %v1500
  %v1502 = vadd.f32 %v1501, 0.4994258
  %v1503 = vmul.f32 %v1483, %v1502
  %v1504 = vadd.f32 %v1503, 1.0
  %v1505 = vrcp.pop %v1504
  %v1506 = vmul.f32 %v1504, %v1505
  %v1507 = vsub.f32 1.0, %v1506
  %v1508 = vmul.f32 %v1505, %v1507
  %v1509 = vadd.f32 %v1505, %v1508
  %vm1510 = vweird.f32 %v1504
  %vm1511 = vweird.f32 %v1505
  %vm1512 = vmor %vm1510, %vm1511
  %v1513 = vsel %vm1512, %v1505, %v1509
  %v1514 = vand.u32 2147483647, %v1504
  %vm1515 = vcmp.eq.f32.partialorder %v1514, 8.507059e+37
  %v1516 = vand.u32 %v1504, 2147483648
  %v1517 = vor.u32 1.1754944e-38, %v1516
  %v1518 = vsel %vm1515, %v1517, %v1513
  %v1519 = vmul.f32 %v1494, %v1518
  %v1520 = vmin.f32 %v1519, 1.0
  %v1521 = vmax.f32 %v1520, -1.0
  %v1522 = vadd.f32 %v1521, 1.0
  %v1523 = vmul.f32 %v1480, %v1522
  %v1524 = vperm.slane %v38, 0
  %vm1525 = vcmask 195584
  %v1527 = vsel %vm1525, %v1523, 0
  %1529 = vmatpush.msra.mxu0 0.0
  %1530 = vmatpush.msra.mxu0 0.0
  %1531 = vmatpush.msra.mxu0 0.0
  %1532 = vmatpush.msra.mxu0 0.0
  %1533 = vmatpush.msra.mxu0 0.0
  %1534 = vmatpush.msra.mxu0 0.0
  %1535 = vmatpush.msra.mxu0 0.0
  %1536 = vmatpush.msra.mxu0 0.0
  %1537 = vmatpush.msra.mxu0 0.0
  %1538 = vmatpush.msra.mxu0 0.0
  %1539 = vmatpush.msra.mxu0 0.0
  %1540 = vmatpush.msra.mxu0 0.0
  %1541 = vmatpush.msra.mxu0 0.0
  %1542 = vmatpush.msra.mxu0 %v43
  %1543 = vmatpush.msra.mxu0 %v42
  %1544 = vmatpush.msra.mxu0 %v41
  %1545 = vmatmul.f32.gmra.mxu0 %v1527
  %v1546 = vpop.f32.mrf.mxu0
  %v1547 = vadd.f32 %v1524, %v1546
  %1548 = vdwg.mxu0
  %vm1549 = vcmask 15360
  %v1550 = vsel %vm1549, %v1547, -inf
  %1551 = vmax.xlane.f32.xlu0 %v1550
  %v1552 = vpop.xlane.xlu0 %1551
  %v1553 = vsub.f32 %v1547, %v1552
  %v1554 = vmul.f32 %v1553, 1.442695
  %v1555 = vpow.pop %v1554
  %v1556 = vsel %vm1549, %v1555, 0.0
  %1557 = vadd.xlane.f32.xlu0 %v1556
  %v1558 = vpop.xlane.xlu0 %1557
  %v1559 = vlog2.pop %v1558
  %v1560 = vmul.f32 %v1559, 0.6931472
  %v1561 = vsub.f32 %v1553, %v1560
  %1562 = vst.msk [vmem:[%s7] sm:$0xff] %vm1549, %v1561
  // Predicated region
  $region30: #{geoer_forward.1} parent=0 // pred_check
    _
  $region31: #{geoer_forward.1} parent=0 // pred_check_branch
    %1564 = sbr.rel (0) target = $region33
  $region32: #{geoer_forward.1} parent=0 // pred_region
    _
  $region33: #{geoer_forward.1} parent=0 // pred_fallthru
    _
  // Predicated region
  $region34: #{geoer_forward.1} parent=0 // pred_check
    _
  $region35: #{geoer_forward.1} parent=0 // pred_check_branch
    %1566 = sbr.rel (0) target = $region37
  $region36: #{geoer_forward.1} parent=0 // pred_region
    _
  $region37: #{geoer_forward.1} parent=0 // pred_fallthru
    _

</llo_original>
